<compile_context>
chip_gen: v5e
topology: v5e:2x2
jax: 0.10.0
libtpu: 0.0.40
codegen_flags: <defaults>
</compile_context>

<pallas_src>
import functools

import jax
import jax.numpy as jnp
from jax.experimental import pallas as pl
from jax.experimental.pallas import tpu as pltpu


def _spatial_linear_attention_kernel(
    x_ref, wqkv_ref, wout_ref, bout_ref, o_ref, *, heads, dim_head, scale, mxu_dtype
):
    hidden = heads * dim_head
    x = x_ref[0]                                    # (C, N)
    n = x.shape[-1]

    # ---- qkv projection: (3*hidden, C) @ (C, N) -> (3*hidden, N), f32 accumulate.
    qkv = jnp.dot(
        wqkv_ref[...].astype(mxu_dtype),
        x.astype(mxu_dtype),
        preferred_element_type=jnp.float32,
    )

    # Leading-dim-only slices/reshapes: no relayout, (dim_head, N) stays minor.
    q = qkv[0 * hidden:1 * hidden].reshape(heads, dim_head, n)
    k = qkv[1 * hidden:2 * hidden].reshape(heads, dim_head, n)
    v = qkv[2 * hidden:3 * hidden].reshape(heads, dim_head, n)

    # ---- q softmax over the feature axis (dim_head); scale folded into the recip.
    q = q - jnp.max(q, axis=1, keepdims=True)
    q = jnp.exp(q)
    q = q * (pl.reciprocal(jnp.sum(q, axis=1, keepdims=True), approx=True) * scale)

    # ---- k softmax over the spatial axis (N).
    k = k - jnp.max(k, axis=-1, keepdims=True)
    k = jnp.exp(k)
    k = k * pl.reciprocal(jnp.sum(k, axis=-1, keepdims=True), approx=True)

    # ---- context^T[h, e, d] = sum_n v[h, e, n] * k[h, d, n]  (big contraction over N)
    ctx_t = jnp.einsum(
        "hen,hdn->hed",
        v.astype(mxu_dtype),
        k.astype(mxu_dtype),
        preferred_element_type=jnp.float32,
    )

    # ---- out[h, e, n] = sum_d context^T[h, e, d] * q[h, d, n]  (canonical matmul)
    out = jnp.einsum(
        "hed,hdn->hen",
        ctx_t.astype(mxu_dtype),
        q.astype(mxu_dtype),
        preferred_element_type=jnp.float32,
    )
    out = out.reshape(hidden, n)                    # heads concatenated along sublanes

    # ---- output projection + bias: (C, hidden) @ (hidden, N) -> (C, N), lane-dense.
    y = jnp.dot(
        wout_ref[...].astype(mxu_dtype),
        out.astype(mxu_dtype),
        preferred_element_type=jnp.float32,
    )
    o_ref[0] = (y + bout_ref[...]).astype(o_ref.dtype)


def spatial_linear_attention_pallas(
    x, w_qkv, w_out, b_out, *, heads, dim_head,
    mxu_dtype=jnp.bfloat16, vmem_limit_bytes=48 * 1024 * 1024,
):
    """x: (B, C, F, H, W); w_qkv: (3*hidden, C); w_out: (C, hidden); b_out: (C,)."""
    B, C, F, H, W = x.shape
    hidden = heads * dim_head
    N = H * W
    BF = B * F
    scale = dim_head ** (-0.5)

    # (B, C, F, H, W) -> (B*F, C, H*W): channels on sublanes, spatial on lanes.
    x_flat = jnp.transpose(x, (0, 2, 1, 3, 4)).reshape(BF, C, N)
    b_col = b_out.reshape(C, 1)

    kernel = functools.partial(
        _spatial_linear_attention_kernel,
        heads=heads, dim_head=dim_head, scale=scale, mxu_dtype=mxu_dtype,
    )

    flops = 2 * BF * N * hidden * (4 * C + 2 * dim_head)
    transcendentals = 2 * BF * hidden * N
    bytes_accessed = 4 * (2 * BF * C * N + 3 * hidden * C + C * hidden + C)

    out_flat = pl.pallas_call(
        kernel,
        out_shape=jax.ShapeDtypeStruct((BF, C, N), x.dtype),
        grid_spec=pltpu.PrefetchScalarGridSpec(
            num_scalar_prefetch=0,
            grid=(BF,),
            in_specs=[
                pl.BlockSpec((1, C, N), lambda i: (i, 0, 0)),
                # Constant index_map -> weights stay resident in VMEM across steps.
                pl.BlockSpec((3 * hidden, C), lambda i: (0, 0)),
                pl.BlockSpec((C, hidden), lambda i: (0, 0)),
                pl.BlockSpec((C, 1), lambda i: (0, 0)),
            ],
            out_specs=pl.BlockSpec((1, C, N), lambda i: (i, 0, 0)),
        ),
        compiler_params=pltpu.CompilerParams(
            dimension_semantics=("parallel",),
            vmem_limit_bytes=vmem_limit_bytes,
        ),
        cost_estimate=pl.CostEstimate(
            flops=flops,
            transcendentals=transcendentals,
            bytes_accessed=bytes_accessed,
        ),
    )(x_flat, w_qkv, w_out, b_col)

    # TODO(synk): for very large spatial N, add an N-tile grid axis with a
    # two-phase (context accumulate, then apply) structure; unnecessary at the
    # resolutions this module is used at (VMEM per frame is O((C+3*hidden)*N)).
    return out_flat.reshape(B, F, C, H, W).transpose(0, 2, 1, 3, 4)


def spatial_linear_attention_ref(x, w_qkv, w_out, b_out, *, heads, dim_head,
                                 mxu_dtype=jnp.bfloat16):
    """Pure-JAX mirror of the PyTorch forward (same bf16-at-MXU / f32-accum numerics)."""
    B, C, F, H, W = x.shape
    hidden = heads * dim_head
    N = H * W
    scale = dim_head ** (-0.5)
    cd = mxu_dtype

    xf = jnp.transpose(x, (0, 2, 1, 3, 4)).reshape(B * F, C, N)
    qkv = jnp.einsum("oc,bcn->bon", w_qkv.astype(cd), xf.astype(cd),
                     preferred_element_type=jnp.float32)
    q, k, v = jnp.split(qkv, 3, axis=1)
    q = q.reshape(B * F, heads, dim_head, N)
    k = k.reshape(B * F, heads, dim_head, N)
    v = v.reshape(B * F, heads, dim_head, N)

    q = jax.nn.softmax(q, axis=-2) * scale
    k = jax.nn.softmax(k, axis=-1)

    ctx = jnp.einsum("bhdn,bhen->bhde", k.astype(cd), v.astype(cd),
                     preferred_element_type=jnp.float32)
    out = jnp.einsum("bhde,bhdn->bhen", ctx.astype(cd), q.astype(cd),
                     preferred_element_type=jnp.float32)
    out = out.reshape(B * F, hidden, N)
    out = jnp.einsum("ce,ben->bcn", w_out.astype(cd), out.astype(cd),
                     preferred_element_type=jnp.float32)
    out = (out + b_out[None, :, None]).astype(x.dtype)
    return out.reshape(B, F, C, H, W).transpose(0, 2, 1, 3, 4)


if __name__ == "__main__":
    # SpatialLinearAttention(dim=32, heads=4, dim_head=32) on x: (B, C, F, H, W)
    B, C, F, H, W = 2, 32, 4, 16, 16
    heads, dim_head = 4, 32
    hidden = heads * dim_head

    key = jax.random.PRNGKey(0)
    kx, kq, ko, kb = jax.random.split(key, 4)

    x = jax.random.normal(kx, (B, C, F, H, W), dtype=jnp.float32)
    # Conv2d 1x1 weights stored as plain matrices: to_qkv (3*hidden, C) no bias,
    # to_out (C, hidden) with bias.
    w_qkv = 0.5 * jax.random.normal(kq, (3 * hidden, C), dtype=jnp.float32)
    w_out = 0.5 * jax.random.normal(ko, (C, hidden), dtype=jnp.float32)
    b_out = 0.1 * jax.random.normal(kb, (C,), dtype=jnp.float32)

    out = spatial_linear_attention_pallas(
        x, w_qkv, w_out, b_out, heads=heads, dim_head=dim_head)
    out = jax.block_until_ready(out)

    ref = spatial_linear_attention_ref(
        x, w_qkv, w_out, b_out, heads=heads, dim_head=dim_head)

    assert out.shape == (B, C, F, H, W)
    max_err = float(jnp.max(jnp.abs(out - ref)))
    assert jnp.allclose(out, ref, atol=2e-2, rtol=2e-2), (
        f"mismatch vs reference, max abs err = {max_err}")
    print("KERNEL_OK")
</pallas_src>

<mosaic_0001>
module attributes {stable_mosaic.version = 11 : i64} {
  func.func @_spatial_linear_attention_kernel(%arg0: i32, %arg1: memref<1x32x256xf32, #tpu.memory_space<vmem>>, %arg2: memref<384x32xf32, #tpu.memory_space<vmem>>, %arg3: memref<32x128xf32, #tpu.memory_space<vmem>>, %arg4: memref<32x1xf32, #tpu.memory_space<vmem>>, %arg5: memref<1x32x256xf32, #tpu.memory_space<vmem>>) attributes {dimension_semantics = [#tpu.dimension_semantics<parallel>], iteration_bounds = array<i64: 8>, scalar_prefetch = 0 : i64, scratch_operands = 0 : i64, tpu.core_type = #tpu.core_type<tc>, window_params = [{transform_indices = @transform_0, window_bounds = array<i64: 1, 32, 256>}, {pipeline_mode = #tpu.pipeline_mode<synchronous>, transform_indices = @transform_1, window_bounds = array<i64: 384, 32>}, {pipeline_mode = #tpu.pipeline_mode<synchronous>, transform_indices = @transform_2, window_bounds = array<i64: 32, 128>}, {pipeline_mode = #tpu.pipeline_mode<synchronous>, transform_indices = @transform_3, window_bounds = array<i64: 32, 1>}, {transform_indices = @transform_4, window_bounds = array<i64: 1, 32, 256>}]} {
    %c0 = arith.constant 0 : index
    %c0_0 = arith.constant 0 : index
    %c0_1 = arith.constant 0 : index
    %0 = vector.load %arg1[%c0, %c0_0, %c0_1] : memref<1x32x256xf32, #tpu.memory_space<vmem>>, vector<1x32x256xf32>
    %1 = vector.shape_cast %0 : vector<1x32x256xf32> to vector<32x256xf32>
    %c0_2 = arith.constant 0 : index
    %c0_3 = arith.constant 0 : index
    %2 = vector.load %arg2[%c0_2, %c0_3] : memref<384x32xf32, #tpu.memory_space<vmem>>, vector<384x32xf32>
    %3 = arith.truncf %2 : vector<384x32xf32> to vector<384x32xbf16>
    %4 = arith.truncf %1 : vector<32x256xf32> to vector<32x256xbf16>
    %cst = arith.constant dense<0.000000e+00> : vector<384x256xf32>
    %5 = tpu.matmul %3, %4, %cst {dimension_numbers = #tpu.dot_dimension_numbers<[1], [0], [0], [1], [0, 0, 1, 1], [], []>} : vector<384x32xbf16>, vector<32x256xbf16>, vector<384x256xf32> -> vector<384x256xf32>
    %6 = vector.extract_strided_slice %5 {offsets = [0, 0], sizes = [128, 256], strides = [1, 1]} : vector<384x256xf32> to vector<128x256xf32>
    %7 = vector.shape_cast %6 : vector<128x256xf32> to vector<4x32x256xf32>
    %8 = vector.extract_strided_slice %5 {offsets = [128, 0], sizes = [128, 256], strides = [1, 1]} : vector<384x256xf32> to vector<128x256xf32>
    %9 = vector.shape_cast %8 : vector<128x256xf32> to vector<4x32x256xf32>
    %10 = vector.extract_strided_slice %5 {offsets = [256, 0], sizes = [128, 256], strides = [1, 1]} : vector<384x256xf32> to vector<128x256xf32>
    %11 = vector.shape_cast %10 : vector<128x256xf32> to vector<4x32x256xf32>
    %cst_4 = arith.constant dense<0xFF800000> : vector<4x256xf32>
    %12 = vector.multi_reduction <maximumf>, %7, %cst_4 [1] : vector<4x32x256xf32> to vector<4x256xf32>
    %13 = vector.shape_cast %12 : vector<4x256xf32> to vector<4x1x256xf32>
    %14 = vector.broadcast %13 : vector<4x1x256xf32> to vector<4x32x256xf32>
    %15 = arith.subf %7, %14 : vector<4x32x256xf32>
    %16 = math.exp %15 : vector<4x32x256xf32>
    %cst_5 = arith.constant dense<0.000000e+00> : vector<4x256xf32>
    %17 = vector.multi_reduction <add>, %16, %cst_5 [1] : vector<4x32x256xf32> to vector<4x256xf32>
    %18 = vector.shape_cast %17 : vector<4x256xf32> to vector<4x1x256xf32>
    %19 = tpu.reciprocal %18 {approx = true} : vector<4x1x256xf32> -> vector<4x1x256xf32>
    %cst_6 = arith.constant 0.176776692 : f32
    %20 = vector.broadcast %cst_6 : f32 to vector<4x1x256xf32>
    %21 = arith.mulf %19, %20 : vector<4x1x256xf32>
    %22 = vector.broadcast %21 : vector<4x1x256xf32> to vector<4x32x256xf32>
    %23 = arith.mulf %16, %22 : vector<4x32x256xf32>
    %cst_7 = arith.constant dense<0xFF800000> : vector<4x32xf32>
    %24 = vector.multi_reduction <maximumf>, %9, %cst_7 [2] : vector<4x32x256xf32> to vector<4x32xf32>
    %25 = vector.shape_cast %24 : vector<4x32xf32> to vector<4x32x1xf32>
    %26 = vector.broadcast %25 : vector<4x32x1xf32> to vector<4x32x256xf32>
    %27 = arith.subf %9, %26 : vector<4x32x256xf32>
    %28 = math.exp %27 : vector<4x32x256xf32>
    %cst_8 = arith.constant dense<0.000000e+00> : vector<4x32xf32>
    %29 = vector.multi_reduction <add>, %28, %cst_8 [2] : vector<4x32x256xf32> to vector<4x32xf32>
    %30 = vector.shape_cast %29 : vector<4x32xf32> to vector<4x32x1xf32>
    %31 = tpu.reciprocal %30 {approx = true} : vector<4x32x1xf32> -> vector<4x32x1xf32>
    %32 = vector.broadcast %31 : vector<4x32x1xf32> to vector<4x32x256xf32>
    %33 = arith.mulf %28, %32 : vector<4x32x256xf32>
    %34 = arith.truncf %11 : vector<4x32x256xf32> to vector<4x32x256xbf16>
    %35 = arith.truncf %33 : vector<4x32x256xf32> to vector<4x32x256xbf16>
    "tpu.trace_start"() <{level = 10 : i32, message = "hen,hdn->hed"}> : () -> ()
    %cst_9 = arith.constant dense<0.000000e+00> : vector<4x32x32xf32>
    %36 = tpu.matmul %34, %35, %cst_9 {dimension_numbers = #tpu.dot_dimension_numbers<[2], [2], [1], [1], [0, 0, 0, 1, 1, 1], [0], [0]>} : vector<4x32x256xbf16>, vector<4x32x256xbf16>, vector<4x32x32xf32> -> vector<4x32x32xf32>
    "tpu.trace_stop"() : () -> ()
    %37 = arith.truncf %36 : vector<4x32x32xf32> to vector<4x32x32xbf16>
    %38 = arith.truncf %23 : vector<4x32x256xf32> to vector<4x32x256xbf16>
    "tpu.trace_start"() <{level = 10 : i32, message = "hed,hdn->hen"}> : () -> ()
    %cst_10 = arith.constant dense<0.000000e+00> : vector<4x32x256xf32>
    %39 = tpu.matmul %37, %38, %cst_10 {dimension_numbers = #tpu.dot_dimension_numbers<[2], [1], [1], [2], [0, 0, 0, 1, 1, 2], [0], [0]>} : vector<4x32x32xbf16>, vector<4x32x256xbf16>, vector<4x32x256xf32> -> vector<4x32x256xf32>
    "tpu.trace_stop"() : () -> ()
    %40 = vector.shape_cast %39 : vector<4x32x256xf32> to vector<128x256xf32>
    %c0_11 = arith.constant 0 : index
    %c0_12 = arith.constant 0 : index
    %41 = vector.load %arg3[%c0_11, %c0_12] : memref<32x128xf32, #tpu.memory_space<vmem>>, vector<32x128xf32>
    %42 = arith.truncf %41 : vector<32x128xf32> to vector<32x128xbf16>
    %43 = arith.truncf %40 : vector<128x256xf32> to vector<128x256xbf16>
    %cst_13 = arith.constant dense<0.000000e+00> : vector<32x256xf32>
    %44 = tpu.matmul %42, %43, %cst_13 {dimension_numbers = #tpu.dot_dimension_numbers<[1], [0], [0], [1], [0, 0, 1, 1], [], []>} : vector<32x128xbf16>, vector<128x256xbf16>, vector<32x256xf32> -> vector<32x256xf32>
    %c0_14 = arith.constant 0 : index
    %c0_15 = arith.constant 0 : index
    %45 = vector.load %arg4[%c0_14, %c0_15] : memref<32x1xf32, #tpu.memory_space<vmem>>, vector<32x1xf32>
    %46 = vector.broadcast %45 : vector<32x1xf32> to vector<32x256xf32>
    %47 = arith.addf %44, %46 : vector<32x256xf32>
    %c0_16 = arith.constant 0 : index
    %c0_17 = arith.constant 0 : index
    %c0_18 = arith.constant 0 : index
    %48 = vector.load %arg5[%c0_16, %c0_17, %c0_18] : memref<1x32x256xf32, #tpu.memory_space<vmem>>, vector<1x32x256xf32>
    %49 = vector.shape_cast %48 : vector<1x32x256xf32> to vector<32x256xf32>
    %50 = vector.shape_cast %47 : vector<32x256xf32> to vector<1x32x256xf32>
    tpu.vector_store %arg5[%c0_16, %c0_17, %c0_18], %50 {strides = array<i32>} : memref<1x32x256xf32, #tpu.memory_space<vmem>>, vector<1x32x256xf32>,
    return
  }
  func.func @transform_0(%arg0: i32) -> (i32, i32, i32) {
    %c0_i32 = arith.constant 0 : i32
    %c0_i32_0 = arith.constant 0 : i32
    %c0_i32_1 = arith.constant 0 : i32
    return %arg0, %c0_i32, %c0_i32_0 : i32, i32, i32
  }
  func.func @transform_1(%arg0: i32) -> (i32, i32) {
    %c0_i32 = arith.constant 0 : i32
    %c0_i32_0 = arith.constant 0 : i32
    %c0_i32_1 = arith.constant 0 : i32
    return %c0_i32, %c0_i32_0 : i32, i32
  }
  func.func @transform_2(%arg0: i32) -> (i32, i32) {
    %c0_i32 = arith.constant 0 : i32
    %c0_i32_0 = arith.constant 0 : i32
    %c0_i32_1 = arith.constant 0 : i32
    return %c0_i32, %c0_i32_0 : i32, i32
  }
  func.func @transform_3(%arg0: i32) -> (i32, i32) {
    %c0_i32 = arith.constant 0 : i32
    %c0_i32_0 = arith.constant 0 : i32
    %c0_i32_1 = arith.constant 0 : i32
    return %c0_i32, %c0_i32_0 : i32, i32
  }
  func.func @transform_4(%arg0: i32) -> (i32, i32, i32) {
    %c0_i32 = arith.constant 0 : i32
    %c0_i32_0 = arith.constant 0 : i32
    %c0_i32_1 = arith.constant 0 : i32
    return %arg0, %c0_i32, %c0_i32_0 : i32, i32, i32
  }
}

</mosaic_0001>

<llo_original>
// kernel: tpu_custom_call.1
$region0: #{tpu_custom_call.1}
  #allocation0 [shape = 'u32[]', space=smem, size = 0x4, offset = 0x4, fixed_abs, tag = 'smem constant byte address 0x4 - core index']
  #allocation1 [shape = 'u32[72,128]{1,0:T(1,128)}', space=vmem, size = 0x9000, scoped, tag = 'internal scratch']
  %s0 = inlined_call_operand.vmem [shape: f32[8,32,256], index: 0, kind: input, shape index: {}]
  %s1 = inlined_call_operand.vmem [shape: f32[384,32], index: 1, kind: input, shape index: {}]
  %s2 = inlined_call_operand.hbm [shape: f32[32,128], index: 2, kind: input, shape index: {}]
  %s3 = inlined_call_operand.vmem [shape: f32[32,1], index: 3, kind: input, shape index: {}]
  %s4 = inlined_call_operand.hbm [shape: f32[8,32,256], index: 4, kind: output, shape index: {}]
  %s5 = sld [smem:[#allocation0]]
  $region53: #{tpu_custom_call.1} parent=0
    _
  %s7 = ssub.s32 1, %s5
  %s8 = scalar_select 0, %s7, %s5
  $region1: #{tpu_custom_call.1} parent=0
    #allocation2 [shape = 'u8[16384]{0}', space=vmem, size = 0x4000, scoped, tag = 'input window, operand 2, single buffered']
    #allocation3 [shape = 's32[2]{0}', space=sflag, size = 0x8, scoped, tag = 'scoped memory for tpu_custom_call.1']
    #allocation4 [shape = 's32[2]{0}', space=sflag, size = 0x8, scoped, tag = 'scoped memory for tpu_custom_call.1']
    #allocation5 [shape = 'u8[65536]{0}', space=vmem, size = 0x10000, scoped, tag = 'output window, operand 0']
    %9 = vsyncpa [#allocation3], 0
    %10 = vsyncpa [#allocation4], 0
    %s11 = scalar_lea.sflag [#allocation4], 1
    %12 = vsyncpa %s11, 0
    loop: start=0, step=1, limit=10
    $region2: #{tpu_custom_call.1} parent=1 // loop_pre_header
      _
    $region3: #{tpu_custom_call.1} parent=1 // loop_header
      %s14 = sphi 0, %s18
      %p15 = scmp.ge.s32.totalorder %s14, 10
      %s24 = sphi 0, %s26
      %s27 = sphi 0, %s24
      %s28 = sphi 0, %s27
      %s44 = sphi 0, %s28
      %s48 = sphi 0, %s48
      %s50 = sphi 0, %s48
      %s51 = sphi 0, %s50
      %s65 = sphi 0, %s51
      %s69 = sphi 0, %s69
      %s71 = sphi 0, %s69
      %s72 = sphi 0, %s71
      %s86 = sphi 0, %s72
      %s90 = sphi 0, %s90
      %s92 = sphi 0, %s90
      %s93 = sphi 0, %s92
      %s107 = sphi 0, %s93
      %s113 = sphi 0, %s115
      %s116 = sphi 0, %s113
      %s117 = sphi 0, %s116
      %s133 = sphi 0, %s117
    $region4: #{tpu_custom_call.1} parent=1 // loop_header_branch
      %17 = sbr.rel (%p15) target = $region8
    $region5: #{tpu_custom_call.1} parent=1 // loop_body
      %s19 = ssub.s32 %s14, 1
      %s20 = ssub.s32 %s14, 2
      %s21 = sadd.s32 %s14, 1
      %s22 = ssub.s32 %s14, %s21
      %p23 = scmp.eq.s32.totalorder %s22, 0
      %s25 = sadd.s32 %s24, 1
      %s26 = scalar_select %p23, %s24, %s25
      %p29 = pneg %p23
      %p30 = scmp.eq.s32.totalorder %s14, 7
      %p31 = por %p29, %p30
      %p32 = scmp.ne.s32.totalorder %s24, %s27
      %p33 = scmp.eq.s32.totalorder %s14, 0
      %p34 = por %p32, %p33
      %p35 = scmp.ne.s32.totalorder %s24, %s27
      %p36 = scmp.eq.s32.totalorder %s19, 7
      %p37 = por %p35, %p36
      %p38 = scmp.ne.s32.totalorder %s27, %s28
      %p39 = scmp.eq.s32.totalorder %s19, 0
      %p40 = por %p38, %p39
      %p41 = scmp.ne.s32.totalorder %s27, %s28
      %p42 = scmp.eq.s32.totalorder %s20, 7
      %p43 = por %p41, %p42
      %p45 = scmp.ne.s32.totalorder %s28, %s44
      %p46 = scmp.eq.s32.totalorder %s20, 0
      %p47 = por %p45, %p46
      %s49 = sadd.s32 %s48, 1
      %p52 = scmp.eq.s32.totalorder %s14, 7
      %p53 = scmp.ne.s32.totalorder %s48, %s50
      %p54 = scmp.eq.s32.totalorder %s14, 0
      %p55 = por %p53, %p54
      %p56 = scmp.ne.s32.totalorder %s48, %s50
      %p57 = scmp.eq.s32.totalorder %s19, 7
      %p58 = por %p56, %p57
      %p59 = scmp.ne.s32.totalorder %s50, %s51
      %p60 = scmp.eq.s32.totalorder %s19, 0
      %p61 = por %p59, %p60
      %p62 = scmp.ne.s32.totalorder %s50, %s51
      %p63 = scmp.eq.s32.totalorder %s20, 7
      %p64 = por %p62, %p63
      %p66 = scmp.ne.s32.totalorder %s51, %s65
      %p67 = scmp.eq.s32.totalorder %s20, 0
      %p68 = por %p66, %p67
      %s70 = sadd.s32 %s69, 1
      %p73 = scmp.eq.s32.totalorder %s14, 7
      %p74 = scmp.ne.s32.totalorder %s69, %s71
      %p75 = scmp.eq.s32.totalorder %s14, 0
      %p76 = por %p74, %p75
      %p77 = scmp.ne.s32.totalorder %s69, %s71
      %p78 = scmp.eq.s32.totalorder %s19, 7
      %p79 = por %p77, %p78
      %p80 = scmp.ne.s32.totalorder %s71, %s72
      %p81 = scmp.eq.s32.totalorder %s19, 0
      %p82 = por %p80, %p81
      %p83 = scmp.ne.s32.totalorder %s71, %s72
      %p84 = scmp.eq.s32.totalorder %s20, 7
      %p85 = por %p83, %p84
      %p87 = scmp.ne.s32.totalorder %s72, %s86
      %p88 = scmp.eq.s32.totalorder %s20, 0
      %p89 = por %p87, %p88
      %s91 = sadd.s32 %s90, 1
      %p94 = scmp.eq.s32.totalorder %s14, 7
      %p95 = scmp.ne.s32.totalorder %s90, %s92
      %p96 = scmp.eq.s32.totalorder %s14, 0
      %p97 = por %p95, %p96
      %p98 = scmp.ne.s32.totalorder %s90, %s92
      %p99 = scmp.eq.s32.totalorder %s19, 7
      %p100 = por %p98, %p99
      %p101 = scmp.ne.s32.totalorder %s92, %s93
      %p102 = scmp.eq.s32.totalorder %s19, 0
      %p103 = por %p101, %p102
      %p104 = scmp.ne.s32.totalorder %s92, %s93
      %p105 = scmp.eq.s32.totalorder %s20, 7
      %p106 = por %p104, %p105
      %p108 = scmp.ne.s32.totalorder %s93, %s107
      %p109 = scmp.eq.s32.totalorder %s20, 0
      %p110 = por %p108, %p109
      %s111 = ssub.s32 %s14, %s21
      %p112 = scmp.eq.s32.totalorder %s111, 0
      %s114 = sadd.s32 %s113, 1
      %s115 = scalar_select %p112, %s113, %s114
      %p118 = pneg %p112
      %p119 = scmp.eq.s32.totalorder %s14, 7
      %p120 = por %p118, %p119
      %p121 = scmp.ne.s32.totalorder %s113, %s116
      %p122 = scmp.eq.s32.totalorder %s14, 0
      %p123 = por %p121, %p122
      %p124 = scmp.ne.s32.totalorder %s113, %s116
      %p125 = scmp.eq.s32.totalorder %s19, 7
      %p126 = por %p124, %p125
      %p127 = scmp.ne.s32.totalorder %s116, %s117
      %p128 = scmp.eq.s32.totalorder %s19, 0
      %p129 = por %p127, %p128
      %p130 = scmp.ne.s32.totalorder %s116, %s117
      %p131 = scmp.eq.s32.totalorder %s20, 7
      %p132 = por %p130, %p131
      %p134 = scmp.ne.s32.totalorder %s117, %s133
      %p135 = scmp.eq.s32.totalorder %s20, 0
      %p136 = por %p134, %p135
      %p137 = scmp.le.s32.totalorder 1, %s14
      %p138 = scmp.lt.s32.totalorder %s14, 9
      %p139 = pnand %p137, %p138
      %p140 = pneg %p139
      // Predicated region
      $region9: #{tpu_custom_call.1} parent=5 // pred_check
        _
      $region10: #{tpu_custom_call.1} parent=5 // pred_check_branch
        %142 = sbr.rel (%p139) target = $region12
      $region11: #{tpu_custom_call.1} parent=5 // pred_region
        %s143 = ssub.s32 %s14, 1
        // Predicated region
        $region13: #{tpu_custom_call.1} parent=11 // pred_check
          %p144 = pneg %p61
        $region14: #{tpu_custom_call.1} parent=11 // pred_check_branch
          %146 = sbr.rel (%p144) target = $region16
        $region15: #{tpu_custom_call.1} parent=11 // pred_region
          _
        $region16: #{tpu_custom_call.1} parent=11 // pred_fallthru
          _
        // Predicated region
        $region17: #{tpu_custom_call.1} parent=11 // pred_check
          %p147 = pneg %p82
        $region18: #{tpu_custom_call.1} parent=11 // pred_check_branch
          %149 = sbr.rel (%p147) target = $region20
        $region19: #{tpu_custom_call.1} parent=11 // pred_region
          %151 = vsyncadd [#allocation3], 0
          %s152 = sshll.u32 %s2, 4
          %s153 = int_to_ptr.hbm [resolvable:$true] %s152
          %s154 = sshll.u32 [#allocation2], 4
          %s155 = int_to_ptr.vmem [resolvable:$true] %s154
          %160 = dma.hbm_to_vmem [thread:$0]  %s153, 512, %s155, [#allocation3], 128, 128, 8
        $region20: #{tpu_custom_call.1} parent=11 // pred_fallthru
          _
        // Predicated region
        $region21: #{tpu_custom_call.1} parent=11 // pred_check
          %p161 = pneg %p103
        $region22: #{tpu_custom_call.1} parent=11 // pred_check_branch
          %163 = sbr.rel (%p161) target = $region24
        $region23: #{tpu_custom_call.1} parent=11 // pred_region
          _
        $region24: #{tpu_custom_call.1} parent=11 // pred_fallthru
          _
      $region12: #{tpu_custom_call.1} parent=5 // pred_fallthru
        _
      %p164 = scmp.lt.s32.totalorder %s14, 8
      // Predicated region
      $region25: #{tpu_custom_call.1} parent=5 // pred_check
        %p165 = pneg %p164
      $region26: #{tpu_custom_call.1} parent=5 // pred_check_branch
        %167 = sbr.rel (%p165) target = $region28
      $region27: #{tpu_custom_call.1} parent=5 // pred_region
        // Predicated region
        $region29: #{tpu_custom_call.1} parent=27 // pred_check
          %p168 = pneg %p34
        $region30: #{tpu_custom_call.1} parent=27 // pred_check_branch
          %170 = sbr.rel (%p168) target = $region32
        $region31: #{tpu_custom_call.1} parent=27 // pred_region
          %p171 = scmp.lt.s32.totalorder %s14, 7
          %s172 = scalar_select %p171, %s14, 7
          %s173 = smul.addr %s172, 8
          %s174 = smul.addr %s173, 8
          %s175 = scalar_lea.vmem %s0, %s174
        $region32: #{tpu_custom_call.1} parent=27 // pred_fallthru
          _
      $region28: #{tpu_custom_call.1} parent=5 // pred_fallthru
        _
      %p176 = scmp.le.s32.totalorder 1, %s14
      %p177 = scmp.lt.s32.totalorder %s14, 9
      %p178 = pnand %p176, %p177
      %p179 = pneg %p178
      // Predicated region
      $region33: #{tpu_custom_call.1} parent=5 // pred_check
        _
      $region34: #{tpu_custom_call.1} parent=5 // pred_check_branch
        %181 = sbr.rel (%p178) target = $region36
      $region35: #{tpu_custom_call.1} parent=5 // pred_region
        %s182 = ssub.s32 %s14, 1
        // Predicated region
        $region37: #{tpu_custom_call.1} parent=35 // pred_check
          %p183 = pneg %p82
        $region38: #{tpu_custom_call.1} parent=35 // pred_check_branch
          %185 = sbr.rel (%p183) target = $region40
        $region39: #{tpu_custom_call.1} parent=35 // pred_region
          %187 = dma.done [#allocation3], 512
        $region40: #{tpu_custom_call.1} parent=35 // pred_fallthru
          _
        %p188 = scmp.lt.s32.totalorder %s19, 7
        %s189 = scalar_select %p188, %s19, 7
        %s190 = smul.addr %s189, 8
        %s191 = smul.addr %s190, 8
        %s192 = scalar_lea.vmem %s0, %s191
        %p193 = pneg %p40
        %p194 = pneg %p37
        %p195 = pneg %p61
        %p196 = pneg %p58
        %p197 = pneg %p82
        %p198 = pneg %p79
        %p199 = pneg %p103
        %p200 = pneg %p100
        %p201 = pneg %p129
        %p202 = pneg %p126
        %s203 = sand.u32 %s116, 1
        %s204 = scalar_lea.sflag [#allocation4], %s203
        %s205 = sand.u32 %s116, 1
        %s206 = smul.addr %s205, 64
        %s207 = scalar_lea.vmem [#allocation5], %s206
        %p208 = scmp.lt.s32.totalorder %s19, 7
        %s209 = scalar_select %p208, %s19, 7
        %s210 = smul.addr %s209, 8
        %s211 = smul.addr %s210, 8
        %s212 = scalar_lea.vmem %s0, %s211
        %v214 = vld [vmem:[%s212] sm:$0xff]
        %v215 = vld [vmem:[%s212 + $0x8] sm:$0xff]
        %v216 = vld [vmem:[%s212 + $0x10] sm:$0xff]
        %v217 = vld [vmem:[%s212 + $0x18] sm:$0xff]
        %v218 = vld [vmem:[%s212 + $0x20] sm:$0xff]
        %v219 = vld [vmem:[%s212 + $0x28] sm:$0xff]
        %v220 = vld [vmem:[%s212 + $0x30] sm:$0xff]
        %v221 = vld [vmem:[%s212 + $0x38] sm:$0xff]
        %v222 = vld [vmem:[%s1] sm:$0xff]
        %v223 = vld [vmem:[%s1 + $0x8] sm:$0xff]
        %v224 = vld [vmem:[%s1 + $0x10] sm:$0xff]
        %v225 = vld [vmem:[%s1 + $0x18] sm:$0xff]
        %v226 = vld [vmem:[%s1 + $0x20] sm:$0xff]
        %v227 = vld [vmem:[%s1 + $0x28] sm:$0xff]
        %v228 = vld [vmem:[%s1 + $0x30] sm:$0xff]
        %v229 = vld [vmem:[%s1 + $0x38] sm:$0xff]
        %v230 = vld [vmem:[%s1 + $0x40] sm:$0xff]
        %v231 = vld [vmem:[%s1 + $0x48] sm:$0xff]
        %v232 = vld [vmem:[%s1 + $0x50] sm:$0xff]
        %v233 = vld [vmem:[%s1 + $0x58] sm:$0xff]
        %v234 = vld [vmem:[%s1 + $0x60] sm:$0xff]
        %v235 = vld [vmem:[%s1 + $0x68] sm:$0xff]
        %v236 = vld [vmem:[%s1 + $0x70] sm:$0xff]
        %v237 = vld [vmem:[%s1 + $0x78] sm:$0xff]
        %v238 = vld [vmem:[%s1 + $0x80] sm:$0xff]
        %v239 = vld [vmem:[%s1 + $0x88] sm:$0xff]
        %v240 = vld [vmem:[%s1 + $0x90] sm:$0xff]
        %v241 = vld [vmem:[%s1 + $0x98] sm:$0xff]
        %v242 = vld [vmem:[%s1 + $0xa0] sm:$0xff]
        %v243 = vld [vmem:[%s1 + $0xa8] sm:$0xff]
        %v244 = vld [vmem:[%s1 + $0xb0] sm:$0xff]
        %v245 = vld [vmem:[%s1 + $0xb8] sm:$0xff]
        %v246 = vld [vmem:[%s1 + $0xc0] sm:$0xff]
        %v247 = vld [vmem:[%s1 + $0xc8] sm:$0xff]
        %v248 = vld [vmem:[%s1 + $0xd0] sm:$0xff]
        %v249 = vld [vmem:[%s1 + $0xd8] sm:$0xff]
        %v250 = vld [vmem:[%s1 + $0xe0] sm:$0xff]
        %v251 = vld [vmem:[%s1 + $0xe8] sm:$0xff]
        %v252 = vld [vmem:[%s1 + $0xf0] sm:$0xff]
        %v253 = vld [vmem:[%s1 + $0xf8] sm:$0xff]
        %v254 = vld [vmem:[%s1 + $0x100] sm:$0xff]
        %v255 = vld [vmem:[%s1 + $0x108] sm:$0xff]
        %v256 = vld [vmem:[%s1 + $0x110] sm:$0xff]
        %v257 = vld [vmem:[%s1 + $0x118] sm:$0xff]
        %v258 = vld [vmem:[%s1 + $0x120] sm:$0xff]
        %v259 = vld [vmem:[%s1 + $0x128] sm:$0xff]
        %v260 = vld [vmem:[%s1 + $0x130] sm:$0xff]
        %v261 = vld [vmem:[%s1 + $0x138] sm:$0xff]
        %v262 = vld [vmem:[%s1 + $0x140] sm:$0xff]
        %v263 = vld [vmem:[%s1 + $0x148] sm:$0xff]
        %v264 = vld [vmem:[%s1 + $0x150] sm:$0xff]
        %v265 = vld [vmem:[%s1 + $0x158] sm:$0xff]
        %v266 = vld [vmem:[%s1 + $0x160] sm:$0xff]
        %v267 = vld [vmem:[%s1 + $0x168] sm:$0xff]
        %v268 = vld [vmem:[%s1 + $0x170] sm:$0xff]
        %v269 = vld [vmem:[%s1 + $0x178] sm:$0xff]
        %v270 = vpack.c.bf16 %v223, %v222
        %v271 = vpack.c.bf16 %v225, %v224
        %v272 = vpack.c.bf16 %v227, %v226
        %v273 = vpack.c.bf16 %v229, %v228
        %v274 = vpack.c.bf16 %v231, %v230
        %v275 = vpack.c.bf16 %v233, %v232
        %v276 = vpack.c.bf16 %v235, %v234
        %v277 = vpack.c.bf16 %v237, %v236
        %v278 = vpack.c.bf16 %v239, %v238
        %v279 = vpack.c.bf16 %v241, %v240
        %v280 = vpack.c.bf16 %v243, %v242
        %v281 = vpack.c.bf16 %v245, %v244
        %v282 = vpack.c.bf16 %v247, %v246
        %v283 = vpack.c.bf16 %v249, %v248
        %v284 = vpack.c.bf16 %v251, %v250
        %v285 = vpack.c.bf16 %v253, %v252
        %v286 = vpack.c.bf16 %v255, %v254
        %v287 = vpack.c.bf16 %v257, %v256
        %v288 = vpack.c.bf16 %v259, %v258
        %v289 = vpack.c.bf16 %v261, %v260
        %v290 = vpack.c.bf16 %v263, %v262
        %v291 = vpack.c.bf16 %v265, %v264
        %v292 = vpack.c.bf16 %v267, %v266
        %v293 = vpack.c.bf16 %v269, %v268
        %v294 = vpack.c.bf16 %v216, %v214
        %v295 = vpack.c.bf16 %v217, %v215
        %v296 = vpack.c.bf16 %v220, %v218
        %v297 = vpack.c.bf16 %v221, %v219
        %vm298 = vcmask 261120
        %v300 = vsel %vm298, %v270, 0
        %v303 = vsel %vm298, %v271, 0
        %v306 = vsel %vm298, %v272, 0
        %v309 = vsel %vm298, %v273, 0
        %v312 = vsel %vm298, %v274, 0
        %v315 = vsel %vm298, %v275, 0
        %v318 = vsel %vm298, %v276, 0
        %v321 = vsel %vm298, %v277, 0
        %v324 = vsel %vm298, %v278, 0
        %v327 = vsel %vm298, %v279, 0
        %v330 = vsel %vm298, %v280, 0
        %v333 = vsel %vm298, %v281, 0
        %v336 = vsel %vm298, %v282, 0
        %v339 = vsel %vm298, %v283, 0
        %v342 = vsel %vm298, %v284, 0
        %v345 = vsel %vm298, %v285, 0
        %v348 = vsel %vm298, %v286, 0
        %v351 = vsel %vm298, %v287, 0
        %v354 = vsel %vm298, %v288, 0
        %v357 = vsel %vm298, %v289, 0
        %v360 = vsel %vm298, %v290, 0
        %v363 = vsel %vm298, %v291, 0
        %v366 = vsel %vm298, %v292, 0
        %v369 = vsel %vm298, %v293, 0
        %371 = vmatpush.bf16.msra.mxu0 0
        %372 = vmatpush.bf16.msra.mxu0 0
        %373 = vmatpush.bf16.msra.mxu0 0
        %374 = vmatpush.bf16.msra.mxu0 0
        %375 = vmatpush.bf16.msra.mxu0 0
        %376 = vmatpush.bf16.msra.mxu0 0
        %377 = vmatpush.bf16.msra.mxu0 %v296
        %378 = vmatpush.bf16.msra.mxu0 %v294
        %379 = vmatmul.bf16.gmra.mxu0 %v300
        %v380 = vpop.f32.mrf.mxu0
        %v381 = vadd.f32 0.0, %v380
        %v382 = vpop.f32.mrf.mxu0
        %v383 = vadd.f32 0.0, %v382
        %384 = vmatmul.bf16.gmra.mxu0 %v303
        %v385 = vpop.f32.mrf.mxu0
        %v386 = vadd.f32 0.0, %v385
        %v387 = vpop.f32.mrf.mxu0
        %v388 = vadd.f32 0.0, %v387
        %389 = vmatmul.bf16.gmra.mxu0 %v306
        %v390 = vpop.f32.mrf.mxu0
        %v391 = vadd.f32 0.0, %v390
        %v392 = vpop.f32.mrf.mxu0
        %v393 = vadd.f32 0.0, %v392
        %394 = vmatmul.bf16.gmra.mxu0 %v309
        %v395 = vpop.f32.mrf.mxu0
        %v396 = vadd.f32 0.0, %v395
        %v397 = vpop.f32.mrf.mxu0
        %v398 = vadd.f32 0.0, %v397
        %399 = vmatmul.bf16.gmra.mxu0 %v312
        %v400 = vpop.f32.mrf.mxu0
        %v401 = vadd.f32 0.0, %v400
        %v402 = vpop.f32.mrf.mxu0
        %v403 = vadd.f32 0.0, %v402
        %404 = vmatmul.bf16.gmra.mxu0 %v315
        %v405 = vpop.f32.mrf.mxu0
        %v406 = vadd.f32 0.0, %v405
        %v407 = vpop.f32.mrf.mxu0
        %v408 = vadd.f32 0.0, %v407
        %409 = vmatmul.bf16.gmra.mxu0 %v318
        %v410 = vpop.f32.mrf.mxu0
        %v411 = vadd.f32 0.0, %v410
        %v412 = vpop.f32.mrf.mxu0
        %v413 = vadd.f32 0.0, %v412
        %414 = vmatmul.bf16.gmra.mxu0 %v321
        %v415 = vpop.f32.mrf.mxu0
        %v416 = vadd.f32 0.0, %v415
        %v417 = vpop.f32.mrf.mxu0
        %v418 = vadd.f32 0.0, %v417
        %419 = vmatmul.bf16.gmra.mxu0 %v324
        %v420 = vpop.f32.mrf.mxu0
        %v421 = vadd.f32 0.0, %v420
        %v422 = vpop.f32.mrf.mxu0
        %v423 = vadd.f32 0.0, %v422
        %424 = vmatmul.bf16.gmra.mxu0 %v327
        %v425 = vpop.f32.mrf.mxu0
        %v426 = vadd.f32 0.0, %v425
        %v427 = vpop.f32.mrf.mxu0
        %v428 = vadd.f32 0.0, %v427
        %429 = vmatmul.bf16.gmra.mxu0 %v330
        %v430 = vpop.f32.mrf.mxu0
        %v431 = vadd.f32 0.0, %v430
        %v432 = vpop.f32.mrf.mxu0
        %v433 = vadd.f32 0.0, %v432
        %434 = vmatmul.bf16.gmra.mxu0 %v333
        %v435 = vpop.f32.mrf.mxu0
        %v436 = vadd.f32 0.0, %v435
        %v437 = vpop.f32.mrf.mxu0
        %v438 = vadd.f32 0.0, %v437
        %439 = vmatmul.bf16.gmra.mxu0 %v336
        %v440 = vpop.f32.mrf.mxu0
        %v441 = vadd.f32 0.0, %v440
        %v442 = vpop.f32.mrf.mxu0
        %v443 = vadd.f32 0.0, %v442
        %444 = vmatmul.bf16.gmra.mxu0 %v339
        %v445 = vpop.f32.mrf.mxu0
        %v446 = vadd.f32 0.0, %v445
        %v447 = vpop.f32.mrf.mxu0
        %v448 = vadd.f32 0.0, %v447
        %449 = vmatmul.bf16.gmra.mxu0 %v342
        %v450 = vpop.f32.mrf.mxu0
        %v451 = vadd.f32 0.0, %v450
        %v452 = vpop.f32.mrf.mxu0
        %v453 = vadd.f32 0.0, %v452
        %454 = vmatmul.bf16.gmra.mxu0 %v345
        %v455 = vpop.f32.mrf.mxu0
        %v456 = vadd.f32 0.0, %v455
        %v457 = vpop.f32.mrf.mxu0
        %v458 = vadd.f32 0.0, %v457
        %459 = vmatmul.bf16.gmra.mxu0 %v348
        %v460 = vpop.f32.mrf.mxu0
        %v461 = vadd.f32 0.0, %v460
        %v462 = vpop.f32.mrf.mxu0
        %v463 = vadd.f32 0.0, %v462
        %464 = vmatmul.bf16.gmra.mxu0 %v351
        %v465 = vpop.f32.mrf.mxu0
        %v466 = vadd.f32 0.0, %v465
        %v467 = vpop.f32.mrf.mxu0
        %v468 = vadd.f32 0.0, %v467
        %469 = vmatmul.bf16.gmra.mxu0 %v354
        %v470 = vpop.f32.mrf.mxu0
        %v471 = vadd.f32 0.0, %v470
        %v472 = vpop.f32.mrf.mxu0
        %v473 = vadd.f32 0.0, %v472
        %474 = vmatmul.bf16.gmra.mxu0 %v357
        %v475 = vpop.f32.mrf.mxu0
        %v476 = vadd.f32 0.0, %v475
        %v477 = vpop.f32.mrf.mxu0
        %v478 = vadd.f32 0.0, %v477
        %479 = vmatmul.bf16.gmra.mxu0 %v360
        %v480 = vpop.f32.mrf.mxu0
        %v481 = vadd.f32 0.0, %v480
        %v482 = vpop.f32.mrf.mxu0
        %v483 = vadd.f32 0.0, %v482
        %484 = vmatmul.bf16.gmra.mxu0 %v363
        %v485 = vpop.f32.mrf.mxu0
        %v486 = vadd.f32 0.0, %v485
        %v487 = vpop.f32.mrf.mxu0
        %v488 = vadd.f32 0.0, %v487
        %489 = vmatmul.bf16.gmra.mxu0 %v366
        %v490 = vpop.f32.mrf.mxu0
        %v491 = vadd.f32 0.0, %v490
        %v492 = vpop.f32.mrf.mxu0
        %v493 = vadd.f32 0.0, %v492
        %494 = vmatmul.bf16.gmra.mxu0 %v369
        %v495 = vpop.f32.mrf.mxu0
        %v496 = vadd.f32 0.0, %v495
        %v497 = vpop.f32.mrf.mxu0
        %v498 = vadd.f32 0.0, %v497
        %499 = vdwg.mxu0
        %500 = vmatpush.bf16.msra.mxu0 0
        %501 = vmatpush.bf16.msra.mxu0 0
        %502 = vmatpush.bf16.msra.mxu0 0
        %503 = vmatpush.bf16.msra.mxu0 0
        %504 = vmatpush.bf16.msra.mxu0 0
        %505 = vmatpush.bf16.msra.mxu0 0
        %506 = vmatpush.bf16.msra.mxu0 %v297
        %507 = vmatpush.bf16.msra.mxu0 %v295
        %508 = vmatmul.bf16.gmra.mxu0 %v300
        %v509 = vpop.f32.mrf.mxu0
        %v510 = vadd.f32 0.0, %v509
        %v511 = vpop.f32.mrf.mxu0
        %v512 = vadd.f32 0.0, %v511
        %513 = vmatmul.bf16.gmra.mxu0 %v303
        %v514 = vpop.f32.mrf.mxu0
        %v515 = vadd.f32 0.0, %v514
        %v516 = vpop.f32.mrf.mxu0
        %v517 = vadd.f32 0.0, %v516
        %518 = vmatmul.bf16.gmra.mxu0 %v306
        %v519 = vpop.f32.mrf.mxu0
        %v520 = vadd.f32 0.0, %v519
        %v521 = vpop.f32.mrf.mxu0
        %v522 = vadd.f32 0.0, %v521
        %523 = vmatmul.bf16.gmra.mxu0 %v309
        %v524 = vpop.f32.mrf.mxu0
        %v525 = vadd.f32 0.0, %v524
        %v526 = vpop.f32.mrf.mxu0
        %v527 = vadd.f32 0.0, %v526
        %528 = vmatmul.bf16.gmra.mxu0 %v312
        %v529 = vpop.f32.mrf.mxu0
        %v530 = vadd.f32 0.0, %v529
        %v531 = vpop.f32.mrf.mxu0
        %v532 = vadd.f32 0.0, %v531
        %533 = vmatmul.bf16.gmra.mxu0 %v315
        %v534 = vpop.f32.mrf.mxu0
        %v535 = vadd.f32 0.0, %v534
        %v536 = vpop.f32.mrf.mxu0
        %v537 = vadd.f32 0.0, %v536
        %538 = vmatmul.bf16.gmra.mxu0 %v318
        %v539 = vpop.f32.mrf.mxu0
        %v540 = vadd.f32 0.0, %v539
        %v541 = vpop.f32.mrf.mxu0
        %v542 = vadd.f32 0.0, %v541
        %543 = vmatmul.bf16.gmra.mxu0 %v321
        %v544 = vpop.f32.mrf.mxu0
        %v545 = vadd.f32 0.0, %v544
        %v546 = vpop.f32.mrf.mxu0
        %v547 = vadd.f32 0.0, %v546
        %548 = vmatmul.bf16.gmra.mxu0 %v324
        %v549 = vpop.f32.mrf.mxu0
        %v550 = vadd.f32 0.0, %v549
        %v551 = vpop.f32.mrf.mxu0
        %v552 = vadd.f32 0.0, %v551
        %553 = vmatmul.bf16.gmra.mxu0 %v327
        %v554 = vpop.f32.mrf.mxu0
        %v555 = vadd.f32 0.0, %v554
        %v556 = vpop.f32.mrf.mxu0
        %v557 = vadd.f32 0.0, %v556
        %558 = vmatmul.bf16.gmra.mxu0 %v330
        %v559 = vpop.f32.mrf.mxu0
        %v560 = vadd.f32 0.0, %v559
        %v561 = vpop.f32.mrf.mxu0
        %v562 = vadd.f32 0.0, %v561
        %563 = vmatmul.bf16.gmra.mxu0 %v333
        %v564 = vpop.f32.mrf.mxu0
        %v565 = vadd.f32 0.0, %v564
        %v566 = vpop.f32.mrf.mxu0
        %v567 = vadd.f32 0.0, %v566
        %568 = vmatmul.bf16.gmra.mxu0 %v336
        %v569 = vpop.f32.mrf.mxu0
        %v570 = vadd.f32 0.0, %v569
        %v571 = vpop.f32.mrf.mxu0
        %v572 = vadd.f32 0.0, %v571
        %573 = vmatmul.bf16.gmra.mxu0 %v339
        %v574 = vpop.f32.mrf.mxu0
        %v575 = vadd.f32 0.0, %v574
        %v576 = vpop.f32.mrf.mxu0
        %v577 = vadd.f32 0.0, %v576
        %578 = vmatmul.bf16.gmra.mxu0 %v342
        %v579 = vpop.f32.mrf.mxu0
        %v580 = vadd.f32 0.0, %v579
        %v581 = vpop.f32.mrf.mxu0
        %v582 = vadd.f32 0.0, %v581
        %583 = vmatmul.bf16.gmra.mxu0 %v345
        %v584 = vpop.f32.mrf.mxu0
        %v585 = vadd.f32 0.0, %v584
        %v586 = vpop.f32.mrf.mxu0
        %v587 = vadd.f32 0.0, %v586
        %588 = vmatmul.bf16.gmra.mxu0 %v348
        %v589 = vpop.f32.mrf.mxu0
        %v590 = vadd.f32 0.0, %v589
        %v591 = vpop.f32.mrf.mxu0
        %v592 = vadd.f32 0.0, %v591
        %593 = vmatmul.bf16.gmra.mxu0 %v351
        %v594 = vpop.f32.mrf.mxu0
        %v595 = vadd.f32 0.0, %v594
        %v596 = vpop.f32.mrf.mxu0
        %v597 = vadd.f32 0.0, %v596
        %598 = vmatmul.bf16.gmra.mxu0 %v354
        %v599 = vpop.f32.mrf.mxu0
        %v600 = vadd.f32 0.0, %v599
        %v601 = vpop.f32.mrf.mxu0
        %v602 = vadd.f32 0.0, %v601
        %603 = vmatmul.bf16.gmra.mxu0 %v357
        %v604 = vpop.f32.mrf.mxu0
        %v605 = vadd.f32 0.0, %v604
        %v606 = vpop.f32.mrf.mxu0
        %v607 = vadd.f32 0.0, %v606
        %608 = vmatmul.bf16.gmra.mxu0 %v360
        %v609 = vpop.f32.mrf.mxu0
        %v610 = vadd.f32 0.0, %v609
        %v611 = vpop.f32.mrf.mxu0
        %v612 = vadd.f32 0.0, %v611
        %613 = vmatmul.bf16.gmra.mxu0 %v363
        %v614 = vpop.f32.mrf.mxu0
        %v615 = vadd.f32 0.0, %v614
        %v616 = vpop.f32.mrf.mxu0
        %v617 = vadd.f32 0.0, %v616
        %618 = vmatmul.bf16.gmra.mxu0 %v366
        %v619 = vpop.f32.mrf.mxu0
        %v620 = vadd.f32 0.0, %v619
        %v621 = vpop.f32.mrf.mxu0
        %v622 = vadd.f32 0.0, %v621
        %623 = vmatmul.bf16.gmra.mxu0 %v369
        %v624 = vpop.f32.mrf.mxu0
        %v625 = vadd.f32 0.0, %v624
        %v626 = vpop.f32.mrf.mxu0
        %v627 = vadd.f32 0.0, %v626
        %628 = vdwg.mxu0
        %v629 = vmax.f32 %v381, %v383
        %v630 = vmax.f32 %v629, %v386
        %v631 = vmax.f32 %v630, %v388
        %v632 = vrot.slane %v631, 4
        %v633 = vmax.f32 %v631, %v632
        %v634 = vrot.slane %v633, 2
        %v635 = vmax.f32 %v633, %v634
        %v636 = vrot.slane %v635, 1
        %v637 = vmax.f32 %v635, %v636
        %v638 = vmax.f32 %v510, %v512
        %v639 = vmax.f32 %v638, %v515
        %v640 = vmax.f32 %v639, %v517
        %v641 = vrot.slane %v640, 4
        %v642 = vmax.f32 %v640, %v641
        %v643 = vrot.slane %v642, 2
        %v644 = vmax.f32 %v642, %v643
        %v645 = vrot.slane %v644, 1
        %v646 = vmax.f32 %v644, %v645
        %v647 = vmax.f32 %v391, %v393
        %v648 = vmax.f32 %v647, %v396
        %v649 = vmax.f32 %v648, %v398
        %v650 = vrot.slane %v649, 4
        %v651 = vmax.f32 %v649, %v650
        %v652 = vrot.slane %v651, 2
        %v653 = vmax.f32 %v651, %v652
        %v654 = vrot.slane %v653, 1
        %v655 = vmax.f32 %v653, %v654
        %v656 = vmax.f32 %v520, %v522
        %v657 = vmax.f32 %v656, %v525
        %v658 = vmax.f32 %v657, %v527
        %v659 = vrot.slane %v658, 4
        %v660 = vmax.f32 %v658, %v659
        %v661 = vrot.slane %v660, 2
        %v662 = vmax.f32 %v660, %v661
        %v663 = vrot.slane %v662, 1
        %v664 = vmax.f32 %v662, %v663
        %v665 = vmax.f32 %v401, %v403
        %v666 = vmax.f32 %v665, %v406
        %v667 = vmax.f32 %v666, %v408
        %v668 = vrot.slane %v667, 4
        %v669 = vmax.f32 %v667, %v668
        %v670 = vrot.slane %v669, 2
        %v671 = vmax.f32 %v669, %v670
        %v672 = vrot.slane %v671, 1
        %v673 = vmax.f32 %v671, %v672
        %v674 = vmax.f32 %v530, %v532
        %v675 = vmax.f32 %v674, %v535
        %v676 = vmax.f32 %v675, %v537
        %v677 = vrot.slane %v676, 4
        %v678 = vmax.f32 %v676, %v677
        %v679 = vrot.slane %v678, 2
        %v680 = vmax.f32 %v678, %v679
        %v681 = vrot.slane %v680, 1
        %v682 = vmax.f32 %v680, %v681
        %v683 = vmax.f32 %v411, %v413
        %v684 = vmax.f32 %v683, %v416
        %v685 = vmax.f32 %v684, %v418
        %v686 = vrot.slane %v685, 4
        %v687 = vmax.f32 %v685, %v686
        %v688 = vrot.slane %v687, 2
        %v689 = vmax.f32 %v687, %v688
        %v690 = vrot.slane %v689, 1
        %v691 = vmax.f32 %v689, %v690
        %v692 = vmax.f32 %v540, %v542
        %v693 = vmax.f32 %v692, %v545
        %v694 = vmax.f32 %v693, %v547
        %v695 = vrot.slane %v694, 4
        %v696 = vmax.f32 %v694, %v695
        %v697 = vrot.slane %v696, 2
        %v698 = vmax.f32 %v696, %v697
        %v699 = vrot.slane %v698, 1
        %v700 = vmax.f32 %v698, %v699
        %v701 = vsub.f32 %v381, %v637
        %v702 = vsub.f32 %v510, %v646
        %v703 = vsub.f32 %v383, %v637
        %v704 = vsub.f32 %v512, %v646
        %v705 = vsub.f32 %v386, %v637
        %v706 = vsub.f32 %v515, %v646
        %v707 = vsub.f32 %v388, %v637
        %v708 = vsub.f32 %v517, %v646
        %v709 = vsub.f32 %v391, %v655
        %v710 = vsub.f32 %v520, %v664
        %v711 = vsub.f32 %v393, %v655
        %v712 = vsub.f32 %v522, %v664
        %v713 = vsub.f32 %v396, %v655
        %v714 = vsub.f32 %v525, %v664
        %v715 = vsub.f32 %v398, %v655
        %v716 = vsub.f32 %v527, %v664
        %v717 = vsub.f32 %v401, %v673
        %v718 = vsub.f32 %v530, %v682
        %v719 = vsub.f32 %v403, %v673
        %v720 = vsub.f32 %v532, %v682
        %v721 = vsub.f32 %v406, %v673
        %v722 = vsub.f32 %v535, %v682
        %v723 = vsub.f32 %v408, %v673
        %v724 = vsub.f32 %v537, %v682
        %v725 = vsub.f32 %v411, %v691
        %v726 = vsub.f32 %v540, %v700
        %v727 = vsub.f32 %v413, %v691
        %v728 = vsub.f32 %v542, %v700
        %v729 = vsub.f32 %v416, %v691
        %v730 = vsub.f32 %v545, %v700
        %v731 = vsub.f32 %v418, %v691
        %v732 = vsub.f32 %v547, %v700
        %v733 = vmul.f32 %v701, 1.442695
        %v734 = vpow.pop %v733
        %v735 = vmul.f32 %v702, 1.442695
        %v736 = vpow.pop %v735
        %v737 = vmul.f32 %v703, 1.442695
        %v738 = vpow.pop %v737
        %v739 = vmul.f32 %v704, 1.442695
        %v740 = vpow.pop %v739
        %v741 = vmul.f32 %v705, 1.442695
        %v742 = vpow.pop %v741
        %v743 = vmul.f32 %v706, 1.442695
        %v744 = vpow.pop %v743
        %v745 = vmul.f32 %v707, 1.442695
        %v746 = vpow.pop %v745
        %v747 = vmul.f32 %v708, 1.442695
        %v748 = vpow.pop %v747
        %v749 = vmul.f32 %v709, 1.442695
        %v750 = vpow.pop %v749
        %v751 = vmul.f32 %v710, 1.442695
        %v752 = vpow.pop %v751
        %v753 = vmul.f32 %v711, 1.442695
        %v754 = vpow.pop %v753
        %v755 = vmul.f32 %v712, 1.442695
        %v756 = vpow.pop %v755
        %v757 = vmul.f32 %v713, 1.442695
        %v758 = vpow.pop %v757
        %v759 = vmul.f32 %v714, 1.442695
        %v760 = vpow.pop %v759
        %v761 = vmul.f32 %v715, 1.442695
        %v762 = vpow.pop %v761
        %v763 = vmul.f32 %v716, 1.442695
        %v764 = vpow.pop %v763
        %v765 = vmul.f32 %v717, 1.442695
        %v766 = vpow.pop %v765
        %v767 = vmul.f32 %v718, 1.442695
        %v768 = vpow.pop %v767
        %v769 = vmul.f32 %v719, 1.442695
        %v770 = vpow.pop %v769
        %v771 = vmul.f32 %v720, 1.442695
        %v772 = vpow.pop %v771
        %v773 = vmul.f32 %v721, 1.442695
        %v774 = vpow.pop %v773
        %v775 = vmul.f32 %v722, 1.442695
        %v776 = vpow.pop %v775
        %v777 = vmul.f32 %v723, 1.442695
        %v778 = vpow.pop %v777
        %v779 = vmul.f32 %v724, 1.442695
        %v780 = vpow.pop %v779
        %v781 = vmul.f32 %v725, 1.442695
        %v782 = vpow.pop %v781
        %v783 = vmul.f32 %v726, 1.442695
        %v784 = vpow.pop %v783
        %v785 = vmul.f32 %v727, 1.442695
        %v786 = vpow.pop %v785
        %v787 = vmul.f32 %v728, 1.442695
        %v788 = vpow.pop %v787
        %v789 = vmul.f32 %v729, 1.442695
        %v790 = vpow.pop %v789
        %v791 = vmul.f32 %v730, 1.442695
        %v792 = vpow.pop %v791
        %v793 = vmul.f32 %v731, 1.442695
        %v794 = vpow.pop %v793
        %v795 = vmul.f32 %v732, 1.442695
        %v796 = vpow.pop %v795
        %v797 = vadd.f32 %v734, %v738
        %v798 = vadd.f32 %v797, %v742
        %v799 = vadd.f32 %v798, %v746
        %v800 = vrot.slane %v799, 4
        %v801 = vadd.f32 %v799, %v800
        %v802 = vrot.slane %v801, 2
        %v803 = vadd.f32 %v801, %v802
        %v804 = vrot.slane %v803, 1
        %v805 = vadd.f32 %v803, %v804
        %v806 = vadd.f32 %v736, %v740
        %v807 = vadd.f32 %v806, %v744
        %v808 = vadd.f32 %v807, %v748
        %v809 = vrot.slane %v808, 4
        %v810 = vadd.f32 %v808, %v809
        %v811 = vrot.slane %v810, 2
        %v812 = vadd.f32 %v810, %v811
        %v813 = vrot.slane %v812, 1
        %v814 = vadd.f32 %v812, %v813
        %v815 = vadd.f32 %v750, %v754
        %v816 = vadd.f32 %v815, %v758
        %v817 = vadd.f32 %v816, %v762
        %v818 = vrot.slane %v817, 4
        %v819 = vadd.f32 %v817, %v818
        %v820 = vrot.slane %v819, 2
        %v821 = vadd.f32 %v819, %v820
        %v822 = vrot.slane %v821, 1
        %v823 = vadd.f32 %v821, %v822
        %v824 = vadd.f32 %v752, %v756
        %v825 = vadd.f32 %v824, %v760
        %v826 = vadd.f32 %v825, %v764
        %v827 = vrot.slane %v826, 4
        %v828 = vadd.f32 %v826, %v827
        %v829 = vrot.slane %v828, 2
        %v830 = vadd.f32 %v828, %v829
        %v831 = vrot.slane %v830, 1
        %v832 = vadd.f32 %v830, %v831
        %v833 = vadd.f32 %v766, %v770
        %v834 = vadd.f32 %v833, %v774
        %v835 = vadd.f32 %v834, %v778
        %v836 = vrot.slane %v835, 4
        %v837 = vadd.f32 %v835, %v836
        %v838 = vrot.slane %v837, 2
        %v839 = vadd.f32 %v837, %v838
        %v840 = vrot.slane %v839, 1
        %v841 = vadd.f32 %v839, %v840
        %v842 = vadd.f32 %v768, %v772
        %v843 = vadd.f32 %v842, %v776
        %v844 = vadd.f32 %v843, %v780
        %v845 = vrot.slane %v844, 4
        %v846 = vadd.f32 %v844, %v845
        %v847 = vrot.slane %v846, 2
        %v848 = vadd.f32 %v846, %v847
        %v849 = vrot.slane %v848, 1
        %v850 = vadd.f32 %v848, %v849
        %v851 = vadd.f32 %v782, %v786
        %v852 = vadd.f32 %v851, %v790
        %v853 = vadd.f32 %v852, %v794
        %v854 = vrot.slane %v853, 4
        %v855 = vadd.f32 %v853, %v854
        %v856 = vrot.slane %v855, 2
        %v857 = vadd.f32 %v855, %v856
        %v858 = vrot.slane %v857, 1
        %v859 = vadd.f32 %v857, %v858
        %v860 = vadd.f32 %v784, %v788
        %v861 = vadd.f32 %v860, %v792
        %v862 = vadd.f32 %v861, %v796
        %v863 = vrot.slane %v862, 4
        %v864 = vadd.f32 %v862, %v863
        %v865 = vrot.slane %v864, 2
        %v866 = vadd.f32 %v864, %v865
        %v867 = vrot.slane %v866, 1
        %v868 = vadd.f32 %v866, %v867
        %v869 = vrcp.pop %v805
        %v870 = vrcp.pop %v814
        %v871 = vrcp.pop %v823
        %v872 = vrcp.pop %v832
        %v873 = vrcp.pop %v841
        %v874 = vrcp.pop %v850
        %v875 = vrcp.pop %v859
        %v876 = vrcp.pop %v868
        %v877 = vmul.f32 %v869, 0.17677669
        %v878 = vmul.f32 %v870, 0.17677669
        %v879 = vmul.f32 %v871, 0.17677669
        %v880 = vmul.f32 %v872, 0.17677669
        %v881 = vmul.f32 %v873, 0.17677669
        %v882 = vmul.f32 %v874, 0.17677669
        %v883 = vmul.f32 %v875, 0.17677669
        %v884 = vmul.f32 %v876, 0.17677669
        %v885 = vmul.f32 %v734, %v877
        %v886 = vmul.f32 %v736, %v878
        %v887 = vmul.f32 %v738, %v877
        %v888 = vmul.f32 %v740, %v878
        %v889 = vmul.f32 %v742, %v877
        %v890 = vmul.f32 %v744, %v878
        %v891 = vmul.f32 %v746, %v877
        %v892 = vmul.f32 %v748, %v878
        %v893 = vmul.f32 %v750, %v879
        %v894 = vmul.f32 %v752, %v880
        %v895 = vmul.f32 %v754, %v879
        %v896 = vmul.f32 %v756, %v880
        %v897 = vmul.f32 %v758, %v879
        %v898 = vmul.f32 %v760, %v880
        %v899 = vmul.f32 %v762, %v879
        %v900 = vmul.f32 %v764, %v880
        %v901 = vmul.f32 %v766, %v881
        %v902 = vmul.f32 %v768, %v882
        %v903 = vmul.f32 %v770, %v881
        %v904 = vmul.f32 %v772, %v882
        %v905 = vmul.f32 %v774, %v881
        %v906 = vmul.f32 %v776, %v882
        %v907 = vmul.f32 %v778, %v881
        %v908 = vmul.f32 %v780, %v882
        %v909 = vmul.f32 %v782, %v883
        %v910 = vmul.f32 %v784, %v884
        %v911 = vmul.f32 %v786, %v883
        %v912 = vmul.f32 %v788, %v884
        %v913 = vmul.f32 %v790, %v883
        %v914 = vmul.f32 %v792, %v884
        %v915 = vmul.f32 %v794, %v883
        %v916 = vmul.f32 %v796, %v884
        %v917 = vmax.f32 %v421, %v550
        %918 = vmax.xlane.f32.xlu0 %v917
        %v919 = vpop.xlane.xlu0 %918
        %v920 = vmax.f32 %v423, %v552
        %921 = vmax.xlane.f32.xlu0 %v920
        %v922 = vpop.xlane.xlu0 %921
        %v923 = vmax.f32 %v426, %v555
        %924 = vmax.xlane.f32.xlu0 %v923
        %v925 = vpop.xlane.xlu0 %924
        %v926 = vmax.f32 %v428, %v557
        %927 = vmax.xlane.f32.xlu0 %v926
        %v928 = vpop.xlane.xlu0 %927
        %v929 = vmax.f32 %v431, %v560
        %930 = vmax.xlane.f32.xlu0 %v929
        %v931 = vpop.xlane.xlu0 %930
        %v932 = vmax.f32 %v433, %v562
        %933 = vmax.xlane.f32.xlu0 %v932
        %v934 = vpop.xlane.xlu0 %933
        %v935 = vmax.f32 %v436, %v565
        %936 = vmax.xlane.f32.xlu0 %v935
        %v937 = vpop.xlane.xlu0 %936
        %v938 = vmax.f32 %v438, %v567
        %939 = vmax.xlane.f32.xlu0 %v938
        %v940 = vpop.xlane.xlu0 %939
        %v941 = vmax.f32 %v441, %v570
        %942 = vmax.xlane.f32.xlu0 %v941
        %v943 = vpop.xlane.xlu0 %942
        %v944 = vmax.f32 %v443, %v572
        %945 = vmax.xlane.f32.xlu0 %v944
        %v946 = vpop.xlane.xlu0 %945
        %v947 = vmax.f32 %v446, %v575
        %948 = vmax.xlane.f32.xlu0 %v947
        %v949 = vpop.xlane.xlu0 %948
        %v950 = vmax.f32 %v448, %v577
        %951 = vmax.xlane.f32.xlu0 %v950
        %v952 = vpop.xlane.xlu0 %951
        %v953 = vmax.f32 %v451, %v580
        %954 = vmax.xlane.f32.xlu0 %v953
        %v955 = vpop.xlane.xlu0 %954
        %v956 = vmax.f32 %v453, %v582
        %957 = vmax.xlane.f32.xlu0 %v956
        %v958 = vpop.xlane.xlu0 %957
        %v959 = vmax.f32 %v456, %v585
        %960 = vmax.xlane.f32.xlu0 %v959
        %v961 = vpop.xlane.xlu0 %960
        %v962 = vmax.f32 %v458, %v587
        %963 = vmax.xlane.f32.xlu0 %v962
        %v964 = vpop.xlane.xlu0 %963
        %v965 = vsub.f32 %v421, %v919
        %v966 = vsub.f32 %v550, %v919
        %v967 = vsub.f32 %v423, %v922
        %v968 = vsub.f32 %v552, %v922
        %v969 = vsub.f32 %v426, %v925
        %v970 = vsub.f32 %v555, %v925
        %v971 = vsub.f32 %v428, %v928
        %v972 = vsub.f32 %v557, %v928
        %v973 = vsub.f32 %v431, %v931
        %v974 = vsub.f32 %v560, %v931
        %v975 = vsub.f32 %v433, %v934
        %v976 = vsub.f32 %v562, %v934
        %v977 = vsub.f32 %v436, %v937
        %v978 = vsub.f32 %v565, %v937
        %v979 = vsub.f32 %v438, %v940
        %v980 = vsub.f32 %v567, %v940
        %v981 = vsub.f32 %v441, %v943
        %v982 = vsub.f32 %v570, %v943
        %v983 = vsub.f32 %v443, %v946
        %v984 = vsub.f32 %v572, %v946
        %v985 = vsub.f32 %v446, %v949
        %v986 = vsub.f32 %v575, %v949
        %v987 = vsub.f32 %v448, %v952
        %v988 = vsub.f32 %v577, %v952
        %v989 = vsub.f32 %v451, %v955
        %v990 = vsub.f32 %v580, %v955
        %v991 = vsub.f32 %v453, %v958
        %v992 = vsub.f32 %v582, %v958
        %v993 = vsub.f32 %v456, %v961
        %v994 = vsub.f32 %v585, %v961
        %v995 = vsub.f32 %v458, %v964
        %v996 = vsub.f32 %v587, %v964
        %v997 = vmul.f32 %v965, 1.442695
        %v998 = vpow.pop %v997
        %v999 = vmul.f32 %v966, 1.442695
        %v1000 = vpow.pop %v999
        %v1001 = vmul.f32 %v967, 1.442695
        %v1002 = vpow.pop %v1001
        %v1003 = vmul.f32 %v968, 1.442695
        %v1004 = vpow.pop %v1003
        %v1005 = vmul.f32 %v969, 1.442695
        %v1006 = vpow.pop %v1005
        %v1007 = vmul.f32 %v970, 1.442695
        %v1008 = vpow.pop %v1007
        %v1009 = vmul.f32 %v971, 1.442695
        %v1010 = vpow.pop %v1009
        %v1011 = vmul.f32 %v972, 1.442695
        %v1012 = vpow.pop %v1011
        %v1013 = vmul.f32 %v973, 1.442695
        %v1014 = vpow.pop %v1013
        %v1015 = vmul.f32 %v974, 1.442695
        %v1016 = vpow.pop %v1015
        %v1017 = vmul.f32 %v975, 1.442695
        %v1018 = vpow.pop %v1017
        %v1019 = vmul.f32 %v976, 1.442695
        %v1020 = vpow.pop %v1019
        %v1021 = vmul.f32 %v977, 1.442695
        %v1022 = vpow.pop %v1021
        %v1023 = vmul.f32 %v978, 1.442695
        %v1024 = vpow.pop %v1023
        %v1025 = vmul.f32 %v979, 1.442695
        %v1026 = vpow.pop %v1025
        %v1027 = vmul.f32 %v980, 1.442695
        %v1028 = vpow.pop %v1027
        %v1029 = vmul.f32 %v981, 1.442695
        %v1030 = vpow.pop %v1029
        %v1031 = vmul.f32 %v982, 1.442695
        %v1032 = vpow.pop %v1031
        %v1033 = vmul.f32 %v983, 1.442695
        %v1034 = vpow.pop %v1033
        %v1035 = vmul.f32 %v984, 1.442695
        %v1036 = vpow.pop %v1035
        %v1037 = vmul.f32 %v985, 1.442695
        %v1038 = vpow.pop %v1037
        %v1039 = vmul.f32 %v986, 1.442695
        %v1040 = vpow.pop %v1039
        %v1041 = vmul.f32 %v987, 1.442695
        %v1042 = vpow.pop %v1041
        %v1043 = vmul.f32 %v988, 1.442695
        %v1044 = vpow.pop %v1043
        %v1045 = vmul.f32 %v989, 1.442695
        %v1046 = vpow.pop %v1045
        %v1047 = vmul.f32 %v990, 1.442695
        %v1048 = vpow.pop %v1047
        %v1049 = vmul.f32 %v991, 1.442695
        %v1050 = vpow.pop %v1049
        %v1051 = vmul.f32 %v992, 1.442695
        %v1052 = vpow.pop %v1051
        %v1053 = vmul.f32 %v993, 1.442695
        %v1054 = vpow.pop %v1053
        %v1055 = vmul.f32 %v994, 1.442695
        %v1056 = vpow.pop %v1055
        %v1057 = vmul.f32 %v995, 1.442695
        %v1058 = vpow.pop %v1057
        %v1059 = vmul.f32 %v996, 1.442695
        %v1060 = vpow.pop %v1059
        %v1061 = vadd.f32 %v998, %v1000
        %1062 = vadd.xlane.f32.xlu0 %v1061
        %v1063 = vpop.xlane.xlu0 %1062
        %v1064 = vadd.f32 %v1002, %v1004
        %1065 = vadd.xlane.f32.xlu0 %v1064
        %v1066 = vpop.xlane.xlu0 %1065
        %v1067 = vadd.f32 %v1006, %v1008
        %1068 = vadd.xlane.f32.xlu0 %v1067
        %v1069 = vpop.xlane.xlu0 %1068
        %v1070 = vadd.f32 %v1010, %v1012
        %1071 = vadd.xlane.f32.xlu0 %v1070
        %v1072 = vpop.xlane.xlu0 %1071
        %v1073 = vadd.f32 %v1014, %v1016
        %1074 = vadd.xlane.f32.xlu0 %v1073
        %v1075 = vpop.xlane.xlu0 %1074
        %v1076 = vadd.f32 %v1018, %v1020
        %1077 = vadd.xlane.f32.xlu0 %v1076
        %v1078 = vpop.xlane.xlu0 %1077
        %v1079 = vadd.f32 %v1022, %v1024
        %1080 = vadd.xlane.f32.xlu0 %v1079
        %v1081 = vpop.xlane.xlu0 %1080
        %v1082 = vadd.f32 %v1026, %v1028
        %1083 = vadd.xlane.f32.xlu0 %v1082
        %v1084 = vpop.xlane.xlu0 %1083
        %v1085 = vadd.f32 %v1030, %v1032
        %1086 = vadd.xlane.f32.xlu0 %v1085
        %v1087 = vpop.xlane.xlu0 %1086
        %v1088 = vadd.f32 %v1034, %v1036
        %1089 = vadd.xlane.f32.xlu0 %v1088
        %v1090 = vpop.xlane.xlu0 %1089
        %v1091 = vadd.f32 %v1038, %v1040
        %1092 = vadd.xlane.f32.xlu0 %v1091
        %v1093 = vpop.xlane.xlu0 %1092
        %v1094 = vadd.f32 %v1042, %v1044
        %1095 = vadd.xlane.f32.xlu0 %v1094
        %v1096 = vpop.xlane.xlu0 %1095
        %v1097 = vadd.f32 %v1046, %v1048
        %1098 = vadd.xlane.f32.xlu0 %v1097
        %v1099 = vpop.xlane.xlu0 %1098
        %v1100 = vadd.f32 %v1050, %v1052
        %1101 = vadd.xlane.f32.xlu0 %v1100
        %v1102 = vpop.xlane.xlu0 %1101
        %v1103 = vadd.f32 %v1054, %v1056
        %1104 = vadd.xlane.f32.xlu0 %v1103
        %v1105 = vpop.xlane.xlu0 %1104
        %v1106 = vadd.f32 %v1058, %v1060
        %1107 = vadd.xlane.f32.xlu0 %v1106
        %v1108 = vpop.xlane.xlu0 %1107
        %v1109 = vrcp.pop %v1063
        %v1110 = vrcp.pop %v1066
        %v1111 = vrcp.pop %v1069
        %v1112 = vrcp.pop %v1072
        %v1113 = vrcp.pop %v1075
        %v1114 = vrcp.pop %v1078
        %v1115 = vrcp.pop %v1081
        %v1116 = vrcp.pop %v1084
        %v1117 = vrcp.pop %v1087
        %v1118 = vrcp.pop %v1090
        %v1119 = vrcp.pop %v1093
        %v1120 = vrcp.pop %v1096
        %v1121 = vrcp.pop %v1099
        %v1122 = vrcp.pop %v1102
        %v1123 = vrcp.pop %v1105
        %v1124 = vrcp.pop %v1108
        %v1125 = vmul.f32 %v998, %v1109
        %v1126 = vmul.f32 %v1000, %v1109
        %v1127 = vmul.f32 %v1002, %v1110
        %v1128 = vmul.f32 %v1004, %v1110
        %v1129 = vmul.f32 %v1006, %v1111
        %v1130 = vmul.f32 %v1008, %v1111
        %v1131 = vmul.f32 %v1010, %v1112
        %v1132 = vmul.f32 %v1012, %v1112
        %v1133 = vmul.f32 %v1014, %v1113
        %v1134 = vmul.f32 %v1016, %v1113
        %v1135 = vmul.f32 %v1018, %v1114
        %v1136 = vmul.f32 %v1020, %v1114
        %v1137 = vmul.f32 %v1022, %v1115
        %v1138 = vmul.f32 %v1024, %v1115
        %v1139 = vmul.f32 %v1026, %v1116
        %v1140 = vmul.f32 %v1028, %v1116
        %v1141 = vmul.f32 %v1030, %v1117
        %v1142 = vmul.f32 %v1032, %v1117
        %v1143 = vmul.f32 %v1034, %v1118
        %v1144 = vmul.f32 %v1036, %v1118
        %v1145 = vmul.f32 %v1038, %v1119
        %v1146 = vmul.f32 %v1040, %v1119
        %v1147 = vmul.f32 %v1042, %v1120
        %v1148 = vmul.f32 %v1044, %v1120
        %v1149 = vmul.f32 %v1046, %v1121
        %v1150 = vmul.f32 %v1048, %v1121
        %v1151 = vmul.f32 %v1050, %v1122
        %v1152 = vmul.f32 %v1052, %v1122
        %v1153 = vmul.f32 %v1054, %v1123
        %v1154 = vmul.f32 %v1056, %v1123
        %v1155 = vmul.f32 %v1058, %v1124
        %v1156 = vmul.f32 %v1060, %v1124
        %v1157 = vpack.c.bf16 %v590, %v461
        %v1158 = vpack.c.bf16 %v592, %v463
        %v1159 = vpack.c.bf16 %v595, %v466
        %v1160 = vpack.c.bf16 %v597, %v468
        %v1161 = vpack.c.bf16 %v600, %v471
        %v1162 = vpack.c.bf16 %v602, %v473
        %v1163 = vpack.c.bf16 %v605, %v476
        %v1164 = vpack.c.bf16 %v607, %v478
        %v1165 = vpack.c.bf16 %v610, %v481
        %v1166 = vpack.c.bf16 %v612, %v483
        %v1167 = vpack.c.bf16 %v615, %v486
        %v1168 = vpack.c.bf16 %v617, %v488
        %v1169 = vpack.c.bf16 %v620, %v491
        %v1170 = vpack.c.bf16 %v622, %v493
        %v1171 = vpack.c.bf16 %v625, %v496
        %v1172 = vpack.c.bf16 %v627, %v498
        %v1173 = vpack.c.bf16 %v1126, %v1125
        %v1174 = vpack.c.bf16 %v1128, %v1127
        %v1175 = vpack.c.bf16 %v1130, %v1129
        %v1176 = vpack.c.bf16 %v1132, %v1131
        %v1177 = vpack.c.bf16 %v1134, %v1133
        %v1178 = vpack.c.bf16 %v1136, %v1135
        %v1179 = vpack.c.bf16 %v1138, %v1137
        %v1180 = vpack.c.bf16 %v1140, %v1139
        %v1181 = vpack.c.bf16 %v1142, %v1141
        %v1182 = vpack.c.bf16 %v1144, %v1143
        %v1183 = vpack.c.bf16 %v1146, %v1145
        %v1184 = vpack.c.bf16 %v1148, %v1147
        %v1185 = vpack.c.bf16 %v1150, %v1149
        %v1186 = vpack.c.bf16 %v1152, %v1151
        %v1187 = vpack.c.bf16 %v1154, %v1153
        %v1188 = vpack.c.bf16 %v1156, %v1155
        %v1193 = vunpack.c.l.b16 %v1157
        %v1194 = vunpack.c.h.b16 %v1157
        %v1195 = vunpack.c.l.b16 %v1158
        %v1196 = vunpack.c.h.b16 %v1158
        %v1197 = vunpack.c.l.b16 %v1159
        %v1198 = vunpack.c.h.b16 %v1159
        %v1199 = vunpack.c.l.b16 %v1160
        %v1200 = vunpack.c.h.b16 %v1160
        %v1201 = vpack.c.b16 %v1195, %v1193
        %v1202 = vpack.c.b16 %v1196, %v1194
        %v1203 = vpack.c.b16 %v1199, %v1197
        %v1204 = vpack.c.b16 %v1200, %v1198
        %v1213 = vunpack.c.l.b16 %v1173
        %v1214 = vunpack.c.h.b16 %v1173
        %v1215 = vunpack.c.l.b16 %v1174
        %v1216 = vunpack.c.h.b16 %v1174
        %v1217 = vunpack.c.l.b16 %v1175
        %v1218 = vunpack.c.h.b16 %v1175
        %v1219 = vunpack.c.l.b16 %v1176
        %v1220 = vunpack.c.h.b16 %v1176
        %v1221 = vpack.c.b16 %v1215, %v1213
        %v1222 = vpack.c.b16 %v1216, %v1214
        %v1223 = vpack.c.b16 %v1219, %v1217
        %v1224 = vpack.c.b16 %v1220, %v1218
        %1229 = vmatpush.bf16.xpose.msra.mxu0 0
        %1230 = vmatpush.bf16.xpose.msra.mxu0 0
        %1231 = vmatpush.bf16.xpose.msra.mxu0 0
        %1232 = vmatpush.bf16.xpose.msra.mxu0 0
        %1233 = vmatpush.bf16.xpose.msra.mxu0 0
        %1234 = vmatpush.bf16.xpose.msra.mxu0 0
        %1235 = vmatpush.bf16.xpose.msra.mxu0 %v1223
        %1236 = vmatpush.bf16.xpose.msra.mxu0 %v1221
        %1237 = vmatmul.bf16.gmra.mxu0 %v1201
        %v1238 = vpop.f32.mrf.mxu0
        %v1239 = vadd.f32 0.0, %v1238
        %v1240 = vpop.f32.mrf.mxu0
        %v1241 = vadd.f32 0.0, %v1240
        %1242 = vmatmul.bf16.gmra.mxu0 %v1203
        %v1243 = vpop.f32.mrf.mxu0
        %v1244 = vadd.f32 0.0, %v1243
        %v1245 = vpop.f32.mrf.mxu0
        %v1246 = vadd.f32 0.0, %v1245
        %1247 = vdwg.mxu0
        %1248 = vmatpush.bf16.xpose.msra.mxu0 0
        %1249 = vmatpush.bf16.xpose.msra.mxu0 0
        %1250 = vmatpush.bf16.xpose.msra.mxu0 0
        %1251 = vmatpush.bf16.xpose.msra.mxu0 0
        %1252 = vmatpush.bf16.xpose.msra.mxu0 0
        %1253 = vmatpush.bf16.xpose.msra.mxu0 0
        %1254 = vmatpush.bf16.xpose.msra.mxu0 %v1224
        %1255 = vmatpush.bf16.xpose.msra.mxu0 %v1222
        %1256 = vmatmul.bf16.gmra.mxu0 %v1202
        %v1257 = vpop.f32.mrf.mxu0
        %v1258 = vadd.f32 %v1239, %v1257
        %v1259 = vpop.f32.mrf.mxu0
        %v1260 = vadd.f32 %v1241, %v1259
        %1261 = vmatmul.bf16.gmra.mxu0 %v1204
        %v1262 = vpop.f32.mrf.mxu0
        %v1263 = vadd.f32 %v1244, %v1262
        %v1264 = vpop.f32.mrf.mxu0
        %v1265 = vadd.f32 %v1246, %v1264
        %1266 = vdwg.mxu0
        %v1271 = vunpack.c.l.b16 %v1161
        %v1272 = vunpack.c.h.b16 %v1161
        %v1273 = vunpack.c.l.b16 %v1162
        %v1274 = vunpack.c.h.b16 %v1162
        %v1275 = vunpack.c.l.b16 %v1163
        %v1276 = vunpack.c.h.b16 %v1163
        %v1277 = vunpack.c.l.b16 %v1164
        %v1278 = vunpack.c.h.b16 %v1164
        %v1279 = vpack.c.b16 %v1273, %v1271
        %v1280 = vpack.c.b16 %v1274, %v1272
        %v1281 = vpack.c.b16 %v1277, %v1275
        %v1282 = vpack.c.b16 %v1278, %v1276
        %v1291 = vunpack.c.l.b16 %v1177
        %v1292 = vunpack.c.h.b16 %v1177
        %v1293 = vunpack.c.l.b16 %v1178
        %v1294 = vunpack.c.h.b16 %v1178
        %v1295 = vunpack.c.l.b16 %v1179
        %v1296 = vunpack.c.h.b16 %v1179
        %v1297 = vunpack.c.l.b16 %v1180
        %v1298 = vunpack.c.h.b16 %v1180
        %v1299 = vpack.c.b16 %v1293, %v1291
        %v1300 = vpack.c.b16 %v1294, %v1292
        %v1301 = vpack.c.b16 %v1297, %v1295
        %v1302 = vpack.c.b16 %v1298, %v1296
        %1307 = vmatpush.bf16.xpose.msra.mxu0 0
        %1308 = vmatpush.bf16.xpose.msra.mxu0 0
        %1309 = vmatpush.bf16.xpose.msra.mxu0 0
        %1310 = vmatpush.bf16.xpose.msra.mxu0 0
        %1311 = vmatpush.bf16.xpose.msra.mxu0 0
        %1312 = vmatpush.bf16.xpose.msra.mxu0 0
        %1313 = vmatpush.bf16.xpose.msra.mxu0 %v1301
        %1314 = vmatpush.bf16.xpose.msra.mxu0 %v1299
        %1315 = vmatmul.bf16.gmra.mxu0 %v1279
        %v1316 = vpop.f32.mrf.mxu0
        %v1317 = vadd.f32 0.0, %v1316
        %v1318 = vpop.f32.mrf.mxu0
        %v1319 = vadd.f32 0.0, %v1318
        %1320 = vmatmul.bf16.gmra.mxu0 %v1281
        %v1321 = vpop.f32.mrf.mxu0
        %v1322 = vadd.f32 0.0, %v1321
        %v1323 = vpop.f32.mrf.mxu0
        %v1324 = vadd.f32 0.0, %v1323
        %1325 = vdwg.mxu0
        %1326 = vmatpush.bf16.xpose.msra.mxu0 0
        %1327 = vmatpush.bf16.xpose.msra.mxu0 0
        %1328 = vmatpush.bf16.xpose.msra.mxu0 0
        %1329 = vmatpush.bf16.xpose.msra.mxu0 0
        %1330 = vmatpush.bf16.xpose.msra.mxu0 0
        %1331 = vmatpush.bf16.xpose.msra.mxu0 0
        %1332 = vmatpush.bf16.xpose.msra.mxu0 %v1302
        %1333 = vmatpush.bf16.xpose.msra.mxu0 %v1300
        %1334 = vmatmul.bf16.gmra.mxu0 %v1280
        %v1335 = vpop.f32.mrf.mxu0
        %v1336 = vadd.f32 %v1317, %v1335
        %v1337 = vpop.f32.mrf.mxu0
        %v1338 = vadd.f32 %v1319, %v1337
        %1339 = vmatmul.bf16.gmra.mxu0 %v1282
        %v1340 = vpop.f32.mrf.mxu0
        %v1341 = vadd.f32 %v1322, %v1340
        %v1342 = vpop.f32.mrf.mxu0
        %v1343 = vadd.f32 %v1324, %v1342
        %1344 = vdwg.mxu0
        %v1349 = vunpack.c.l.b16 %v1165
        %v1350 = vunpack.c.h.b16 %v1165
        %v1351 = vunpack.c.l.b16 %v1166
        %v1352 = vunpack.c.h.b16 %v1166
        %v1353 = vunpack.c.l.b16 %v1167
        %v1354 = vunpack.c.h.b16 %v1167
        %v1355 = vunpack.c.l.b16 %v1168
        %v1356 = vunpack.c.h.b16 %v1168
        %v1357 = vpack.c.b16 %v1351, %v1349
        %v1358 = vpack.c.b16 %v1352, %v1350
        %v1359 = vpack.c.b16 %v1355, %v1353
        %v1360 = vpack.c.b16 %v1356, %v1354
        %v1369 = vunpack.c.l.b16 %v1181
        %v1370 = vunpack.c.h.b16 %v1181
        %v1371 = vunpack.c.l.b16 %v1182
        %v1372 = vunpack.c.h.b16 %v1182
        %v1373 = vunpack.c.l.b16 %v1183
        %v1374 = vunpack.c.h.b16 %v1183
        %v1375 = vunpack.c.l.b16 %v1184
        %v1376 = vunpack.c.h.b16 %v1184
        %v1377 = vpack.c.b16 %v1371, %v1369
        %v1378 = vpack.c.b16 %v1372, %v1370
        %v1379 = vpack.c.b16 %v1375, %v1373
        %v1380 = vpack.c.b16 %v1376, %v1374
        %1385 = vmatpush.bf16.xpose.msra.mxu0 0
        %1386 = vmatpush.bf16.xpose.msra.mxu0 0
        %1387 = vmatpush.bf16.xpose.msra.mxu0 0
        %1388 = vmatpush.bf16.xpose.msra.mxu0 0
        %1389 = vmatpush.bf16.xpose.msra.mxu0 0
        %1390 = vmatpush.bf16.xpose.msra.mxu0 0
        %1391 = vmatpush.bf16.xpose.msra.mxu0 %v1379
        %1392 = vmatpush.bf16.xpose.msra.mxu0 %v1377
        %1393 = vmatmul.bf16.gmra.mxu0 %v1357
        %v1394 = vpop.f32.mrf.mxu0
        %v1395 = vadd.f32 0.0, %v1394
        %v1396 = vpop.f32.mrf.mxu0
        %v1397 = vadd.f32 0.0, %v1396
        %1398 = vmatmul.bf16.gmra.mxu0 %v1359
        %v1399 = vpop.f32.mrf.mxu0
        %v1400 = vadd.f32 0.0, %v1399
        %v1401 = vpop.f32.mrf.mxu0
        %v1402 = vadd.f32 0.0, %v1401
        %1403 = vdwg.mxu0
        %1404 = vmatpush.bf16.xpose.msra.mxu0 0
        %1405 = vmatpush.bf16.xpose.msra.mxu0 0
        %1406 = vmatpush.bf16.xpose.msra.mxu0 0
        %1407 = vmatpush.bf16.xpose.msra.mxu0 0
        %1408 = vmatpush.bf16.xpose.msra.mxu0 0
        %1409 = vmatpush.bf16.xpose.msra.mxu0 0
        %1410 = vmatpush.bf16.xpose.msra.mxu0 %v1380
        %1411 = vmatpush.bf16.xpose.msra.mxu0 %v1378
        %1412 = vmatmul.bf16.gmra.mxu0 %v1358
        %v1413 = vpop.f32.mrf.mxu0
        %v1414 = vadd.f32 %v1395, %v1413
        %v1415 = vpop.f32.mrf.mxu0
        %v1416 = vadd.f32 %v1397, %v1415
        %1417 = vmatmul.bf16.gmra.mxu0 %v1360
        %v1418 = vpop.f32.mrf.mxu0
        %v1419 = vadd.f32 %v1400, %v1418
        %v1420 = vpop.f32.mrf.mxu0
        %v1421 = vadd.f32 %v1402, %v1420
        %1422 = vdwg.mxu0
        %v1427 = vunpack.c.l.b16 %v1169
        %v1428 = vunpack.c.h.b16 %v1169
        %v1429 = vunpack.c.l.b16 %v1170
        %v1430 = vunpack.c.h.b16 %v1170
        %v1431 = vunpack.c.l.b16 %v1171
        %v1432 = vunpack.c.h.b16 %v1171
        %v1433 = vunpack.c.l.b16 %v1172
        %v1434 = vunpack.c.h.b16 %v1172
        %v1435 = vpack.c.b16 %v1429, %v1427
        %v1436 = vpack.c.b16 %v1430, %v1428
        %v1437 = vpack.c.b16 %v1433, %v1431
        %v1438 = vpack.c.b16 %v1434, %v1432
        %v1447 = vunpack.c.l.b16 %v1185
        %v1448 = vunpack.c.h.b16 %v1185
        %v1449 = vunpack.c.l.b16 %v1186
        %v1450 = vunpack.c.h.b16 %v1186
        %v1451 = vunpack.c.l.b16 %v1187
        %v1452 = vunpack.c.h.b16 %v1187
        %v1453 = vunpack.c.l.b16 %v1188
        %v1454 = vunpack.c.h.b16 %v1188
        %v1455 = vpack.c.b16 %v1449, %v1447
        %v1456 = vpack.c.b16 %v1450, %v1448
        %v1457 = vpack.c.b16 %v1453, %v1451
        %v1458 = vpack.c.b16 %v1454, %v1452
        %1463 = vmatpush.bf16.xpose.msra.mxu0 0
        %1464 = vmatpush.bf16.xpose.msra.mxu0 0
        %1465 = vmatpush.bf16.xpose.msra.mxu0 0
        %1466 = vmatpush.bf16.xpose.msra.mxu0 0
        %1467 = vmatpush.bf16.xpose.msra.mxu0 0
        %1468 = vmatpush.bf16.xpose.msra.mxu0 0
        %1469 = vmatpush.bf16.xpose.msra.mxu0 %v1457
        %1470 = vmatpush.bf16.xpose.msra.mxu0 %v1455
        %1471 = vmatmul.bf16.gmra.mxu0 %v1435
        %v1472 = vpop.f32.mrf.mxu0
        %v1473 = vadd.f32 0.0, %v1472
        %v1474 = vpop.f32.mrf.mxu0
        %v1475 = vadd.f32 0.0, %v1474
        %1476 = vmatmul.bf16.gmra.mxu0 %v1437
        %v1477 = vpop.f32.mrf.mxu0
        %v1478 = vadd.f32 0.0, %v1477
        %v1479 = vpop.f32.mrf.mxu0
        %v1480 = vadd.f32 0.0, %v1479
        %1481 = vdwg.mxu0
        %1482 = vmatpush.bf16.xpose.msra.mxu0 0
        %1483 = vmatpush.bf16.xpose.msra.mxu0 0
        %1484 = vmatpush.bf16.xpose.msra.mxu0 0
        %1485 = vmatpush.bf16.xpose.msra.mxu0 0
        %1486 = vmatpush.bf16.xpose.msra.mxu0 0
        %1487 = vmatpush.bf16.xpose.msra.mxu0 0
        %1488 = vmatpush.bf16.xpose.msra.mxu0 %v1458
        %1489 = vmatpush.bf16.xpose.msra.mxu0 %v1456
        %1490 = vmatmul.bf16.gmra.mxu0 %v1436
        %v1491 = vpop.f32.mrf.mxu0
        %v1492 = vadd.f32 %v1473, %v1491
        %v1493 = vpop.f32.mrf.mxu0
        %v1494 = vadd.f32 %v1475, %v1493
        %1495 = vmatmul.bf16.gmra.mxu0 %v1438
        %v1496 = vpop.f32.mrf.mxu0
        %v1497 = vadd.f32 %v1478, %v1496
        %v1498 = vpop.f32.mrf.mxu0
        %v1499 = vadd.f32 %v1480, %v1498
        %1500 = vdwg.mxu0
        %v1501 = vpack.c.bf16 %v1258, %v1258
        %v1502 = vpack.c.bf16 %v1260, %v1260
        %v1503 = vpack.c.bf16 %v1263, %v1263
        %v1504 = vpack.c.bf16 %v1265, %v1265
        %v1505 = vpack.c.bf16 %v1336, %v1336
        %v1506 = vpack.c.bf16 %v1338, %v1338
        %v1507 = vpack.c.bf16 %v1341, %v1341
        %v1508 = vpack.c.bf16 %v1343, %v1343
        %v1509 = vpack.c.bf16 %v1414, %v1414
        %v1510 = vpack.c.bf16 %v1416, %v1416
        %v1511 = vpack.c.bf16 %v1419, %v1419
        %v1512 = vpack.c.bf16 %v1421, %v1421
        %v1513 = vpack.c.bf16 %v1492, %v1492
        %v1514 = vpack.c.bf16 %v1494, %v1494
        %v1515 = vpack.c.bf16 %v1497, %v1497
        %v1516 = vpack.c.bf16 %v1499, %v1499
        %v1517 = vpack.c.bf16 %v886, %v885
        %v1518 = vpack.c.bf16 %v888, %v887
        %v1519 = vpack.c.bf16 %v890, %v889
        %v1520 = vpack.c.bf16 %v892, %v891
        %v1521 = vpack.c.bf16 %v894, %v893
        %v1522 = vpack.c.bf16 %v896, %v895
        %v1523 = vpack.c.bf16 %v898, %v897
        %v1524 = vpack.c.bf16 %v900, %v899
        %v1525 = vpack.c.bf16 %v902, %v901
        %v1526 = vpack.c.bf16 %v904, %v903
        %v1527 = vpack.c.bf16 %v906, %v905
        %v1528 = vpack.c.bf16 %v908, %v907
        %v1529 = vpack.c.bf16 %v910, %v909
        %v1530 = vpack.c.bf16 %v912, %v911
        %v1531 = vpack.c.bf16 %v914, %v913
        %v1532 = vpack.c.bf16 %v916, %v915
        %v1537 = vunpack.c.l.b16 %v1501
        %v1538 = vunpack.c.l.b16 %v1502
        %v1539 = vunpack.c.l.b16 %v1503
        %v1540 = vunpack.c.l.b16 %v1504
        %v1541 = vpack.c.b16 %v1538, %v1537
        %v1542 = vpack.c.b16 %v1540, %v1539
        %v1547 = vunpack.c.l.b16 %v1517
        %v1548 = vunpack.c.h.b16 %v1517
        %v1549 = vunpack.c.l.b16 %v1518
        %v1550 = vunpack.c.h.b16 %v1518
        %v1551 = vunpack.c.l.b16 %v1519
        %v1552 = vunpack.c.h.b16 %v1519
        %v1553 = vunpack.c.l.b16 %v1520
        %v1554 = vunpack.c.h.b16 %v1520
        %v1555 = vpack.c.b16 %v1549, %v1547
        %v1556 = vpack.c.b16 %v1550, %v1548
        %v1557 = vpack.c.b16 %v1553, %v1551
        %v1558 = vpack.c.b16 %v1554, %v1552
        %v1564 = vsel %vm298, %v1541, 0
        %v1567 = vsel %vm298, %v1542, 0
        %1569 = vmatpush.bf16.msra.mxu0 0
        %1570 = vmatpush.bf16.msra.mxu0 0
        %1571 = vmatpush.bf16.msra.mxu0 0
        %1572 = vmatpush.bf16.msra.mxu0 0
        %1573 = vmatpush.bf16.msra.mxu0 0
        %1574 = vmatpush.bf16.msra.mxu0 0
        %1575 = vmatpush.bf16.msra.mxu0 %v1557
        %1576 = vmatpush.bf16.msra.mxu0 %v1555
        %1577 = vmatmul.bf16.gmra.mxu0 %v1564
        %v1578 = vpop.f32.mrf.mxu0
        %v1579 = vadd.f32 0.0, %v1578
        %v1580 = vpop.f32.mrf.mxu0
        %v1581 = vadd.f32 0.0, %v1580
        %1582 = vmatmul.bf16.gmra.mxu0 %v1567
        %v1583 = vpop.f32.mrf.mxu0
        %v1584 = vadd.f32 0.0, %v1583
        %v1585 = vpop.f32.mrf.mxu0
        %v1586 = vadd.f32 0.0, %v1585
        %1587 = vdwg.mxu0
        %1588 = vmatpush.bf16.msra.mxu0 0
        %1589 = vmatpush.bf16.msra.mxu0 0
        %1590 = vmatpush.bf16.msra.mxu0 0
        %1591 = vmatpush.bf16.msra.mxu0 0
        %1592 = vmatpush.bf16.msra.mxu0 0
        %1593 = vmatpush.bf16.msra.mxu0 0
        %1594 = vmatpush.bf16.msra.mxu0 %v1558
        %1595 = vmatpush.bf16.msra.mxu0 %v1556
        %1596 = vmatmul.bf16.gmra.mxu0 %v1564
        %v1597 = vpop.f32.mrf.mxu0
        %v1598 = vadd.f32 0.0, %v1597
        %v1599 = vpop.f32.mrf.mxu0
        %v1600 = vadd.f32 0.0, %v1599
        %1601 = vmatmul.bf16.gmra.mxu0 %v1567
        %v1602 = vpop.f32.mrf.mxu0
        %v1603 = vadd.f32 0.0, %v1602
        %v1604 = vpop.f32.mrf.mxu0
        %v1605 = vadd.f32 0.0, %v1604
        %1606 = vdwg.mxu0
        %v1611 = vunpack.c.l.b16 %v1505
        %v1612 = vunpack.c.l.b16 %v1506
        %v1613 = vunpack.c.l.b16 %v1507
        %v1614 = vunpack.c.l.b16 %v1508
        %v1615 = vpack.c.b16 %v1612, %v1611
        %v1616 = vpack.c.b16 %v1614, %v1613
        %v1621 = vunpack.c.l.b16 %v1521
        %v1622 = vunpack.c.h.b16 %v1521
        %v1623 = vunpack.c.l.b16 %v1522
        %v1624 = vunpack.c.h.b16 %v1522
        %v1625 = vunpack.c.l.b16 %v1523
        %v1626 = vunpack.c.h.b16 %v1523
        %v1627 = vunpack.c.l.b16 %v1524
        %v1628 = vunpack.c.h.b16 %v1524
        %v1629 = vpack.c.b16 %v1623, %v1621
        %v1630 = vpack.c.b16 %v1624, %v1622
        %v1631 = vpack.c.b16 %v1627, %v1625
        %v1632 = vpack.c.b16 %v1628, %v1626
        %v1638 = vsel %vm298, %v1615, 0
        %v1641 = vsel %vm298, %v1616, 0
        %1643 = vmatpush.bf16.msra.mxu0 0
        %1644 = vmatpush.bf16.msra.mxu0 0
        %1645 = vmatpush.bf16.msra.mxu0 0
        %1646 = vmatpush.bf16.msra.mxu0 0
        %1647 = vmatpush.bf16.msra.mxu0 0
        %1648 = vmatpush.bf16.msra.mxu0 0
        %1649 = vmatpush.bf16.msra.mxu0 %v1631
        %1650 = vmatpush.bf16.msra.mxu0 %v1629
        %1651 = vmatmul.bf16.gmra.mxu0 %v1638
        %v1652 = vpop.f32.mrf.mxu0
        %v1653 = vadd.f32 0.0, %v1652
        %v1654 = vpop.f32.mrf.mxu0
        %v1655 = vadd.f32 0.0, %v1654
        %1656 = vmatmul.bf16.gmra.mxu0 %v1641
        %v1657 = vpop.f32.mrf.mxu0
        %v1658 = vadd.f32 0.0, %v1657
        %v1659 = vpop.f32.mrf.mxu0
        %v1660 = vadd.f32 0.0, %v1659
        %1661 = vdwg.mxu0
        %1662 = vmatpush.bf16.msra.mxu0 0
        %1663 = vmatpush.bf16.msra.mxu0 0
        %1664 = vmatpush.bf16.msra.mxu0 0
        %1665 = vmatpush.bf16.msra.mxu0 0
        %1666 = vmatpush.bf16.msra.mxu0 0
        %1667 = vmatpush.bf16.msra.mxu0 0
        %1668 = vmatpush.bf16.msra.mxu0 %v1632
        %1669 = vmatpush.bf16.msra.mxu0 %v1630
        %1670 = vmatmul.bf16.gmra.mxu0 %v1638
        %v1671 = vpop.f32.mrf.mxu0
        %v1672 = vadd.f32 0.0, %v1671
        %v1673 = vpop.f32.mrf.mxu0
        %v1674 = vadd.f32 0.0, %v1673
        %1675 = vmatmul.bf16.gmra.mxu0 %v1641
        %v1676 = vpop.f32.mrf.mxu0
        %v1677 = vadd.f32 0.0, %v1676
        %v1678 = vpop.f32.mrf.mxu0
        %v1679 = vadd.f32 0.0, %v1678
        %1680 = vdwg.mxu0
        %v1685 = vunpack.c.l.b16 %v1509
        %v1686 = vunpack.c.l.b16 %v1510
        %v1687 = vunpack.c.l.b16 %v1511
        %v1688 = vunpack.c.l.b16 %v1512
        %v1689 = vpack.c.b16 %v1686, %v1685
        %v1690 = vpack.c.b16 %v1688, %v1687
        %v1695 = vunpack.c.l.b16 %v1525
        %v1696 = vunpack.c.h.b16 %v1525
        %v1697 = vunpack.c.l.b16 %v1526
        %v1698 = vunpack.c.h.b16 %v1526
        %v1699 = vunpack.c.l.b16 %v1527
        %v1700 = vunpack.c.h.b16 %v1527
        %v1701 = vunpack.c.l.b16 %v1528
        %v1702 = vunpack.c.h.b16 %v1528
        %v1703 = vpack.c.b16 %v1697, %v1695
        %v1704 = vpack.c.b16 %v1698, %v1696
        %v1705 = vpack.c.b16 %v1701, %v1699
        %v1706 = vpack.c.b16 %v1702, %v1700
        %v1712 = vsel %vm298, %v1689, 0
        %v1715 = vsel %vm298, %v1690, 0
        %1717 = vmatpush.bf16.msra.mxu0 0
        %1718 = vmatpush.bf16.msra.mxu0 0
        %1719 = vmatpush.bf16.msra.mxu0 0
        %1720 = vmatpush.bf16.msra.mxu0 0
        %1721 = vmatpush.bf16.msra.mxu0 0
        %1722 = vmatpush.bf16.msra.mxu0 0
        %1723 = vmatpush.bf16.msra.mxu0 %v1705
        %1724 = vmatpush.bf16.msra.mxu0 %v1703
        %1725 = vmatmul.bf16.gmra.mxu0 %v1712
        %v1726 = vpop.f32.mrf.mxu0
        %v1727 = vadd.f32 0.0, %v1726
        %v1728 = vpop.f32.mrf.mxu0
        %v1729 = vadd.f32 0.0, %v1728
        %1730 = vmatmul.bf16.gmra.mxu0 %v1715
        %v1731 = vpop.f32.mrf.mxu0
        %v1732 = vadd.f32 0.0, %v1731
        %v1733 = vpop.f32.mrf.mxu0
        %v1734 = vadd.f32 0.0, %v1733
        %1735 = vdwg.mxu0
        %1736 = vmatpush.bf16.msra.mxu0 0
        %1737 = vmatpush.bf16.msra.mxu0 0
        %1738 = vmatpush.bf16.msra.mxu0 0
        %1739 = vmatpush.bf16.msra.mxu0 0
        %1740 = vmatpush.bf16.msra.mxu0 0
        %1741 = vmatpush.bf16.msra.mxu0 0
        %1742 = vmatpush.bf16.msra.mxu0 %v1706
        %1743 = vmatpush.bf16.msra.mxu0 %v1704
        %1744 = vmatmul.bf16.gmra.mxu0 %v1712
        %v1745 = vpop.f32.mrf.mxu0
        %v1746 = vadd.f32 0.0, %v1745
        %v1747 = vpop.f32.mrf.mxu0
        %v1748 = vadd.f32 0.0, %v1747
        %1749 = vmatmul.bf16.gmra.mxu0 %v1715
        %v1750 = vpop.f32.mrf.mxu0
        %v1751 = vadd.f32 0.0, %v1750
        %v1752 = vpop.f32.mrf.mxu0
        %v1753 = vadd.f32 0.0, %v1752
        %1754 = vdwg.mxu0
        %v1759 = vunpack.c.l.b16 %v1513
        %v1760 = vunpack.c.l.b16 %v1514
        %v1761 = vunpack.c.l.b16 %v1515
        %v1762 = vunpack.c.l.b16 %v1516
        %v1763 = vpack.c.b16 %v1760, %v1759
        %v1764 = vpack.c.b16 %v1762, %v1761
        %v1769 = vunpack.c.l.b16 %v1529
        %v1770 = vunpack.c.h.b16 %v1529
        %v1771 = vunpack.c.l.b16 %v1530
        %v1772 = vunpack.c.h.b16 %v1530
        %v1773 = vunpack.c.l.b16 %v1531
        %v1774 = vunpack.c.h.b16 %v1531
        %v1775 = vunpack.c.l.b16 %v1532
        %v1776 = vunpack.c.h.b16 %v1532
        %v1777 = vpack.c.b16 %v1771, %v1769
        %v1778 = vpack.c.b16 %v1772, %v1770
        %v1779 = vpack.c.b16 %v1775, %v1773
        %v1780 = vpack.c.b16 %v1776, %v1774
        %v1786 = vsel %vm298, %v1763, 0
        %v1789 = vsel %vm298, %v1764, 0
        %1791 = vmatpush.bf16.msra.mxu0 0
        %1792 = vmatpush.bf16.msra.mxu0 0
        %1793 = vmatpush.bf16.msra.mxu0 0
        %1794 = vmatpush.bf16.msra.mxu0 0
        %1795 = vmatpush.bf16.msra.mxu0 0
        %1796 = vmatpush.bf16.msra.mxu0 0
        %1797 = vmatpush.bf16.msra.mxu0 %v1779
        %1798 = vmatpush.bf16.msra.mxu0 %v1777
        %1799 = vmatmul.bf16.gmra.mxu0 %v1786
        %v1800 = vpop.f32.mrf.mxu0
        %v1801 = vadd.f32 0.0, %v1800
        %v1802 = vpop.f32.mrf.mxu0
        %v1803 = vadd.f32 0.0, %v1802
        %1804 = vmatmul.bf16.gmra.mxu0 %v1789
        %v1805 = vpop.f32.mrf.mxu0
        %v1806 = vadd.f32 0.0, %v1805
        %v1807 = vpop.f32.mrf.mxu0
        %v1808 = vadd.f32 0.0, %v1807
        %1809 = vdwg.mxu0
        %1810 = vmatpush.bf16.msra.mxu0 0
        %1811 = vmatpush.bf16.msra.mxu0 0
        %1812 = vmatpush.bf16.msra.mxu0 0
        %1813 = vmatpush.bf16.msra.mxu0 0
        %1814 = vmatpush.bf16.msra.mxu0 0
        %1815 = vmatpush.bf16.msra.mxu0 0
        %1816 = vmatpush.bf16.msra.mxu0 %v1780
        %1817 = vmatpush.bf16.msra.mxu0 %v1778
        %1818 = vmatmul.bf16.gmra.mxu0 %v1786
        %v1819 = vpop.f32.mrf.mxu0
        %v1820 = vadd.f32 0.0, %v1819
        %v1821 = vpop.f32.mrf.mxu0
        %v1822 = vadd.f32 0.0, %v1821
        %1823 = vmatmul.bf16.gmra.mxu0 %v1789
        %v1824 = vpop.f32.mrf.mxu0
        %v1825 = vadd.f32 0.0, %v1824
        %v1826 = vpop.f32.mrf.mxu0
        %v1827 = vadd.f32 0.0, %v1826
        %1828 = vdwg.mxu0
        %v1829 = vld [vmem:[#allocation2] sm:$0xff]
        %v1830 = vld [vmem:[#allocation2 + $0x8] sm:$0xff]
        %v1831 = vld [vmem:[#allocation2 + $0x10] sm:$0xff]
        %v1832 = vld [vmem:[#allocation2 + $0x18] sm:$0xff]
        %v1833 = vpack.c.bf16 %v1830, %v1829
        %v1834 = vpack.c.bf16 %v1832, %v1831
        %v1835 = vpack.c.bf16 %v1581, %v1579
        %v1836 = vpack.c.bf16 %v1600, %v1598
        %v1837 = vpack.c.bf16 %v1586, %v1584
        %v1838 = vpack.c.bf16 %v1605, %v1603
        %v1839 = vpack.c.bf16 %v1655, %v1653
        %v1840 = vpack.c.bf16 %v1674, %v1672
        %v1841 = vpack.c.bf16 %v1660, %v1658
        %v1842 = vpack.c.bf16 %v1679, %v1677
        %v1843 = vpack.c.bf16 %v1729, %v1727
        %v1844 = vpack.c.bf16 %v1748, %v1746
        %v1845 = vpack.c.bf16 %v1734, %v1732
        %v1846 = vpack.c.bf16 %v1753, %v1751
        %v1847 = vpack.c.bf16 %v1803, %v1801
        %v1848 = vpack.c.bf16 %v1822, %v1820
        %v1849 = vpack.c.bf16 %v1808, %v1806
        %v1850 = vpack.c.bf16 %v1827, %v1825
        %v1851 = vld [vmem:[%s3] sm:$0xff]
        %v1852 = vld [vmem:[%s3 + $0x8] sm:$0xff]
        %v1853 = vld [vmem:[%s3 + $0x10] sm:$0xff]
        %v1854 = vld [vmem:[%s3 + $0x18] sm:$0xff]
        %1856 = vset.pattern.permute.xlu0 0
        %1857 = vperm.xlu0 %1856, %v1851
        %v1858 = vpop.permute.xlu0 %1857
        %1861 = vset.pattern.permute.xlu0 0
        %1862 = vperm.xlu0 %1861, %v1852
        %v1863 = vpop.permute.xlu0 %1862
        %1866 = vset.pattern.permute.xlu0 0
        %1867 = vperm.xlu0 %1866, %v1853
        %v1868 = vpop.permute.xlu0 %1867
        %1871 = vset.pattern.permute.xlu0 0
        %1872 = vperm.xlu0 %1871, %v1854
        %v1873 = vpop.permute.xlu0 %1872
        %1875 = vmatpush.bf16.msra.mxu0 %v1849
        %1876 = vmatpush.bf16.msra.mxu0 %v1847
        %1877 = vmatpush.bf16.msra.mxu0 %v1845
        %1878 = vmatpush.bf16.msra.mxu0 %v1843
        %1879 = vmatpush.bf16.msra.mxu0 %v1841
        %1880 = vmatpush.bf16.msra.mxu0 %v1839
        %1881 = vmatpush.bf16.msra.mxu0 %v1837
        %1882 = vmatpush.bf16.msra.mxu0 %v1835
        %1883 = vmatmul.bf16.gmra.mxu0 %v1833
        %v1884 = vpop.f32.mrf.mxu0
        %v1885 = vadd.f32 %v1858, %v1884
        %v1886 = vpop.f32.mrf.mxu0
        %v1887 = vadd.f32 %v1863, %v1886
        %1888 = vmatmul.bf16.gmra.mxu0 %v1834
        %v1889 = vpop.f32.mrf.mxu0
        %v1890 = vadd.f32 %v1868, %v1889
        %v1891 = vpop.f32.mrf.mxu0
        %v1892 = vadd.f32 %v1873, %v1891
        %1893 = vdwg.mxu0
        %1894 = vmatpush.bf16.msra.mxu0 %v1850
        %1895 = vmatpush.bf16.msra.mxu0 %v1848
        %1896 = vmatpush.bf16.msra.mxu0 %v1846
        %1897 = vmatpush.bf16.msra.mxu0 %v1844
        %1898 = vmatpush.bf16.msra.mxu0 %v1842
        %1899 = vmatpush.bf16.msra.mxu0 %v1840
        %1900 = vmatpush.bf16.msra.mxu0 %v1838
        %1901 = vmatpush.bf16.msra.mxu0 %v1836
        %1902 = vmatmul.bf16.gmra.mxu0 %v1833
        %v1903 = vpop.f32.mrf.mxu0
        %v1904 = vadd.f32 %v1858, %v1903
        %v1905 = vpop.f32.mrf.mxu0
        %v1906 = vadd.f32 %v1863, %v1905
        %1907 = vmatmul.bf16.gmra.mxu0 %v1834
        %v1908 = vpop.f32.mrf.mxu0
        %v1909 = vadd.f32 %v1868, %v1908
        %v1910 = vpop.f32.mrf.mxu0
        %v1911 = vadd.f32 %v1873, %v1910
        %1912 = vdwg.mxu0
        %1913 = vst [vmem:[%s207] sm:$0xff] %v1885
        %1914 = vst [vmem:[%s207 + $0x8] sm:$0xff] %v1904
        %1915 = vst [vmem:[%s207 + $0x10] sm:$0xff] %v1887
        %1916 = vst [vmem:[%s207 + $0x18] sm:$0xff] %v1906
        %1917 = vst [vmem:[%s207 + $0x20] sm:$0xff] %v1890
        %1918 = vst [vmem:[%s207 + $0x28] sm:$0xff] %v1909
        %1919 = vst [vmem:[%s207 + $0x30] sm:$0xff] %v1892
        %1920 = vst [vmem:[%s207 + $0x38] sm:$0xff] %v1911
        %s1921 = sand.u32 %s116, 1
        %s1922 = scalar_lea.sflag [#allocation4], %s1921
        %s1923 = sand.u32 %s116, 1
        %s1924 = smul.addr %s1923, 64
        %s1925 = scalar_lea.vmem [#allocation5], %s1924
        // Predicated region
        $region41: #{tpu_custom_call.1} parent=35 // pred_check
          %p1926 = pneg %p126
        $region42: #{tpu_custom_call.1} parent=35 // pred_check_branch
          %1928 = sbr.rel (%p1926) target = $region44
        $region43: #{tpu_custom_call.1} parent=35 // pred_region
          %1930 = vsyncadd %s1922, 0
          %s1931 = smul.addr %s19, 8
          %s1932 = smul.addr %s1931, 8
          %s1933 = scalar_lea.hbm %s4, %s1932
          %s1934 = sshll.u32 %s1925, 4
          %s1935 = int_to_ptr.vmem [resolvable:$true] %s1934
          %s1936 = sshll.u32 %s1933, 4
          %s1937 = int_to_ptr.hbm [resolvable:$true] %s1936
          %1942 = dma.vmem_to_hbm [thread:$0]  %s1935, 1024, %s1937, %s1922, 256, 256, 16
        $region44: #{tpu_custom_call.1} parent=35 // pred_fallthru
          _
      $region36: #{tpu_custom_call.1} parent=5 // pred_fallthru
        _
      %p1943 = scmp.le.s32.totalorder 2, %s14
      // Predicated region
      $region45: #{tpu_custom_call.1} parent=5 // pred_check
        %p1944 = pneg %p1943
      $region46: #{tpu_custom_call.1} parent=5 // pred_check_branch
        %1946 = sbr.rel (%p1944) target = $region48
      $region47: #{tpu_custom_call.1} parent=5 // pred_region
        %s1947 = ssub.s32 %s14, 2
        // Predicated region
        $region49: #{tpu_custom_call.1} parent=47 // pred_check
          %p1948 = pneg %p132
        $region50: #{tpu_custom_call.1} parent=47 // pred_check_branch
          %1950 = sbr.rel (%p1948) target = $region52
        $region51: #{tpu_custom_call.1} parent=47 // pred_region
          %s1951 = sand.u32 %s117, 1
          %s1952 = scalar_lea.sflag [#allocation4], %s1951
          %s1953 = sand.u32 %s117, 1
          %s1954 = smul.addr %s1953, 64
          %s1955 = scalar_lea.vmem [#allocation5], %s1954
          %1957 = dma.done %s1952, 1024
        $region52: #{tpu_custom_call.1} parent=47 // pred_fallthru
          _
      $region48: #{tpu_custom_call.1} parent=5 // pred_fallthru
        _
    $region6: #{tpu_custom_call.1} parent=1 // loop_footer
      %s18 = sadd.s32 1, %s14
    $region7: #{tpu_custom_call.1} parent=1 // loop_footer_branch
      %13 = sbr.rel target = $region3
    $region8: #{tpu_custom_call.1} parent=1 // loop_exit
      _
    %1958 = vsyncpa [#allocation3], 1
    %s1959 = scalar_lea.sflag [#allocation3], 1
    %1960 = vsyncpa %s1959, 1
    %1961 = vsyncpa [#allocation4], 1
    %s1962 = scalar_lea.sflag [#allocation4], 1
    %1963 = vsyncpa %s1962, 1

</llo_original>
